<compile_context>
chip_gen: v7x
topology: tpu7x:2x2x1
jax: 0.10.0
libtpu: 0.0.40
codegen_flags: <defaults>
</compile_context>

<pallas_src>
import math
import jax
import jax.numpy as jnp
from jax.experimental import pallas as pl
from jax.experimental.pallas import tpu as pltpu

NUM_HEADS = 8
LN_EPS = 1e-5
_SQRT2 = math.sqrt(2.0)
_TT_MAX = 256     # max time steps per grid slab
_CHUNK = 32       # rows per inner chunk (bounds vreg pressure)


# ----------------------------------------------------------------------------
# small math helpers
# ----------------------------------------------------------------------------
def _erf_kernel(x):
    # Abramowitz & Stegun 7.1.26 rational approximation, |err| <= 1.5e-7
    # (plus approx-reciprocal error).  Kernel-only: uses pl.reciprocal.
    a1, a2, a3, a4, a5 = 0.254829592, -0.284496736, 1.421413741, -1.453152027, 1.061405429
    p = 0.3275911
    s = jnp.where(x >= 0.0, 1.0, -1.0)
    ax = jnp.abs(x)
    t = pl.reciprocal(1.0 + p * ax, approx=True)     # EUP slot
    poly = ((((a5 * t + a4) * t + a3) * t + a2) * t + a1) * t
    return s * (1.0 - poly * jnp.exp(-ax * ax))


def _gelu(x, erf_fn):
    # nn.GELU() default: 0.5*x*(1+erf(x/sqrt(2)))
    return 0.5 * x * (1.0 + erf_fn(x / _SQRT2))


def _layernorm(x, gamma, beta):
    m = jnp.mean(x, axis=-1, keepdims=True)
    v = jnp.mean((x - m) * (x - m), axis=-1, keepdims=True)
    return (x - m) * jax.lax.rsqrt(v + LN_EPS) * gamma + beta


def _round_up(x, m):
    return -(-x // m) * m


# ----------------------------------------------------------------------------
# kernel 1: attention (over batch axis) + FeatureFusion + masked time-sum
#           -> per-parallel-slice pooled partial sums (P, B, H)
# ----------------------------------------------------------------------------
def _make_main_kernel(B, T, TT, CH, S, H, masked):
    n_chunks = TT // CH

    def kernel(x_ref, wqkv_ref, bqkv_ref, hsum_ref, hbc_ref, wof_ref, ffvec_ref,
               partial_ref, qkv_ref):
        p = pl.program_id(0)
        s = pl.program_id(1)

        @pl.when(s == 0)
        def _init():
            partial_ref[...] = jnp.zeros_like(partial_ref)

        # --- fused QKV projection for the whole slab as ONE GEMM; the (H,3H)
        #     RHS stays resident across all B*TT rows.  1/sqrt(dh) is already
        #     folded into the Wq / bq columns.  Result staged in VMEM scratch.
        x2 = x_ref[...].reshape(B * TT, H)
        qkv_ref[...] = (jnp.dot(x2, wqkv_ref[...],
                                preferred_element_type=jnp.float32)
                        + bqkv_ref[...])

        t_base = (p * S + s) * TT      # global time offset of this slab

        def chunk_body(ci):
            hsum = hsum_ref[...]                       # (H, heads) 0/1 segment-sum
            hbc = hbc_ref[...]                         # (heads, H) head -> lane bcast
            bof = ffvec_ref[0:1]                       # (1, H)
            gf = ffvec_ref[1:2]
            betaf = ffvec_ref[2:3]

            q, k, v = [], [], []
            for b in range(B):
                rows = pl.ds(pl.multiple_of(b * TT + ci * CH, 8), CH)
                q.append(qkv_ref[rows, 0:H])
                k.append(qkv_ref[rows, H:2 * H])
                v.append(qkv_ref[rows, 2 * H:3 * H])

            if masked:
                tids = (t_base + ci * CH
                        + jax.lax.broadcasted_iota(jnp.int32, (CH, 1), 0))
                valid = tids < T                       # (CH, 1) column mask

            # --- TimeAttention over the batch axis (batch_first=False quirk),
            #     fully lane-dense.  B is small, so the b/c loops are unrolled.
            # TODO(synk): the N=8 / K=8 head-sum/broadcast matmuls below could
            #             move to the XLU (lane repeat / roll) to free MXU slots.
            sums = []
            for b in range(B):
                scores = [jnp.dot(q[b] * k[c], hsum,
                                  preferred_element_type=jnp.float32)
                          for c in range(B)]           # each (CH, heads)
                m = scores[0]
                for c in range(1, B):
                    m = jnp.maximum(m, scores[c])
                exps = [jnp.exp(sc - m) for sc in scores]
                denom = exps[0]
                for c in range(1, B):
                    denom = denom + exps[c]
                inv = pl.reciprocal(denom, approx=True)          # (CH, heads)

                attn = jnp.zeros((CH, H), jnp.float32)
                for c in range(B):
                    w_full = jnp.dot(exps[c] * inv, hbc,
                                     preferred_element_type=jnp.float32)
                    attn = attn + w_full * v[c]

                # out_proj folded into FeatureFusion:
                #   f = GELU(LN(attn @ (wo@wf) + (bo@wf + bf)))
                f = jnp.dot(attn.astype(wof_ref.dtype), wof_ref[...],
                            preferred_element_type=jnp.float32) + bof
                f = _layernorm(f, gf, betaf)
                f = _gelu(f, _erf_kernel)
                if masked:
                    f = jnp.where(valid, f, 0.0)
                sums.append(jnp.sum(f, axis=0, keepdims=True))   # (1, H)

            # one full-block accumulator update per chunk
            partial_ref[...] += jnp.concatenate(sums, axis=0)[None]

        pl.loop(0, n_chunks)(chunk_body)

    return kernel


# ----------------------------------------------------------------------------
# kernel 2: pooled mean + the three classifier heads (one grid point)
# ----------------------------------------------------------------------------
def _make_classifier_kernel(inv_T, D2):
    def kernel(part_ref, w1s_ref, vecs1_ref, w2_ref, b2_ref, logits_ref):
        pooled = jnp.sum(part_ref[...], axis=0) * inv_T          # (B, H)
        # the three head-1 linears fused into one (H, 3*D2) GEMM
        h = (jnp.dot(pooled, w1s_ref[...], preferred_element_type=jnp.float32)
             + vecs1_ref[0:1])                                   # (B, 3*D2)
        for i in range(3):
            sl = slice(i * D2, (i + 1) * D2)
            hi = _layernorm(h[:, sl], vecs1_ref[1:2, sl], vecs1_ref[2:3, sl])
            hi = _gelu(hi, _erf_kernel)
            # Dropout(0.1) is identity at inference time.
            logits_ref[i] = (jnp.dot(hi, w2_ref[i],
                                     preferred_element_type=jnp.float32)
                             + b2_ref[i])
    return kernel


# ----------------------------------------------------------------------------
# wrapper
# ----------------------------------------------------------------------------
def timbre_classifier_forward(hidden_states, params, *, time_block=None,
                              use_bf16=False):
    """hidden_states: (B, T, H) f32 wav2vec2 last_hidden_state.
    Returns (thickness, brightness, solidity) logits, each (B, C)."""
    B, T, H = hidden_states.shape
    C = params['b2'].shape[-1]
    D2 = params['w1'].shape[-1]
    assert H % NUM_HEADS == 0
    dh = H // NUM_HEADS
    scale = 1.0 / math.sqrt(dh)
    f32 = jnp.float32

    # ---- time-axis blocking: slab TT per grid step, inner chunks of CH rows
    base = min(T if time_block is None else time_block, T, _TT_MAX)
    if base <= _CHUNK:
        TT = _round_up(base, 8)
        CH = TT
    else:
        TT = _round_up(base, _CHUNK)
        CH = _CHUNK
    T_pad = _round_up(T, TT)
    num_slabs = T_pad // TT
    masked = (T_pad != T)

    # leading "parallel" grid axis -> v7x megacore splits the time reduction
    P = 2 if (num_slabs % 2 == 0 and num_slabs >= 2) else 1
    S = num_slabs // P

    x = hidden_states.astype(f32)
    if T_pad != T:
        x = jnp.pad(x, ((0, 0), (0, T_pad - T), (0, 0)))

    # fused QKV weight with 1/sqrt(dh) folded into the query columns
    wqkv = jnp.concatenate([params['wq'] * scale, params['wk'], params['wv']], axis=1)
    bqkv = jnp.concatenate([params['bq'] * scale, params['bk'], params['bv']], axis=1).astype(f32)

    # attention out_proj folded into the FeatureFusion linear (exact: no
    # nonlinearity between them)
    wof = params['wo'] @ params['wf']
    bof = params['bo'] @ params['wf'] + params['bf']
    ffvec = jnp.concatenate([bof, params['gf'], params['betaf']], axis=0).astype(f32)  # (3, H)

    # per-head lane segment-sum / broadcast matrices (constant 0/1, lane-dense)
    head_ids = jnp.arange(H, dtype=jnp.int32) // dh
    hsum = (head_ids[:, None] == jnp.arange(NUM_HEADS, dtype=jnp.int32)[None, :]).astype(f32)
    hbc = hsum.T

    # v6e/v7x fast path: bf16 MXU operands (accumulation stays f32)
    mxu_dtype = jnp.bfloat16 if use_bf16 else f32
    x = x.astype(mxu_dtype)
    wqkv = wqkv.astype(mxu_dtype)
    wof = wof.astype(mxu_dtype)

    weight_args = [wqkv, bqkv, hsum, hbc, wof, ffvec]

    def _wspec(a):
        nd = a.ndim
        return pl.BlockSpec(a.shape, lambda p, s, _nd=nd: (0,) * _nd)

    partials = pl.pallas_call(
        _make_main_kernel(B, T, TT, CH, S, H, masked),
        out_shape=jax.ShapeDtypeStruct((P, B, H), jnp.float32),
        grid_spec=pltpu.PrefetchScalarGridSpec(
            num_scalar_prefetch=0,
            grid=(P, S),
            in_specs=[pl.BlockSpec((B, TT, H), lambda p, s: (0, p * S + s, 0))]
                     + [_wspec(a) for a in weight_args],
            out_specs=pl.BlockSpec((1, B, H), lambda p, s: (p, 0, 0)),
            scratch_shapes=[pltpu.VMEM((B * TT, 3 * H), jnp.float32)],
        ),
        compiler_params=pltpu.CompilerParams(
            dimension_semantics=("parallel", "arbitrary")),
    )(x, *weight_args)

    # ---- classifier heads: weights packed once (w1 of all 3 heads fused)
    w1s = jnp.concatenate([params['w1'][i] for i in range(3)], axis=1).astype(f32)   # (H, 3*D2)
    vecs1 = jnp.concatenate([
        jnp.concatenate([params['b1'][i] for i in range(3)], axis=1),
        jnp.concatenate([params['g1'][i] for i in range(3)], axis=1),
        jnp.concatenate([params['beta1'][i] for i in range(3)], axis=1),
    ], axis=0).astype(f32)                                                            # (3, 3*D2)
    w2 = params['w2'].astype(f32)
    b2 = params['b2'].astype(f32)
    cls_args = [partials, w1s, vecs1, w2, b2]

    def _cspec(a):
        nd = a.ndim
        return pl.BlockSpec(a.shape, lambda i, _nd=nd: (0,) * _nd)

    logits = pl.pallas_call(
        _make_classifier_kernel(1.0 / T, D2),
        out_shape=jax.ShapeDtypeStruct((3, B, C), jnp.float32),
        grid_spec=pltpu.PrefetchScalarGridSpec(
            num_scalar_prefetch=0,
            grid=(1,),
            in_specs=[_cspec(a) for a in cls_args],
            out_specs=pl.BlockSpec((3, B, C), lambda i: (0, 0, 0)),
        ),
        compiler_params=pltpu.CompilerParams(dimension_semantics=("arbitrary",)),
    )(*cls_args)

    return logits[0], logits[1], logits[2]


# ----------------------------------------------------------------------------
# synthetic parameters + plain-JAX reference (same quirky semantics)
# ----------------------------------------------------------------------------
def init_params(key, H=128, C=5, hidden2=256):
    # Deterministic synthetic parameters (weights stored pre-transposed [in, out]).
    keys = jax.random.split(key, 14)

    def nrm(k, shape, scl=0.05):
        return (scl * jax.random.normal(k, shape)).astype(jnp.float32)

    return {
        'wq': nrm(keys[0], (H, H)), 'wk': nrm(keys[1], (H, H)), 'wv': nrm(keys[2], (H, H)),
        'bq': nrm(keys[3], (1, H)), 'bk': nrm(keys[4], (1, H)), 'bv': nrm(keys[5], (1, H)),
        'wo': nrm(keys[6], (H, H)), 'bo': nrm(keys[7], (1, H)),
        'wf': nrm(keys[8], (H, H)), 'bf': nrm(keys[9], (1, H)),
        'gf': jnp.ones((1, H), jnp.float32), 'betaf': jnp.zeros((1, H), jnp.float32),
        'w1': nrm(keys[10], (3, H, hidden2)), 'b1': nrm(keys[11], (3, 1, hidden2)),
        'g1': jnp.ones((3, 1, hidden2), jnp.float32),
        'beta1': jnp.zeros((3, 1, hidden2), jnp.float32),
        'w2': nrm(keys[12], (3, hidden2, C)), 'b2': nrm(keys[13], (3, 1, C)),
    }


def reference_forward(hidden_states, P):
    """Plain-JAX reference with the same (batch_first=False) semantics."""
    B, T, H = hidden_states.shape
    dh = H // NUM_HEADS
    xs = jnp.transpose(hidden_states, (1, 0, 2))  # (T, B, H)
    erf = jax.scipy.special.erf

    def step(xn):  # xn: (B, H)  -- attention over the batch axis
        q = xn @ P['wq'] + P['bq']
        k = xn @ P['wk'] + P['bk']
        v = xn @ P['wv'] + P['bv']
        outs = []
        for h in range(NUM_HEADS):
            sl = slice(h * dh, (h + 1) * dh)
            s = (q[:, sl] @ k[:, sl].T) / math.sqrt(dh)
            outs.append(jax.nn.softmax(s, axis=-1) @ v[:, sl])
        att = jnp.concatenate(outs, axis=-1) @ P['wo'] + P['bo']
        f = att @ P['wf'] + P['bf']
        f = _layernorm(f, P['gf'], P['betaf'])
        return _gelu(f, erf)

    enhanced = jax.vmap(step)(xs)            # (T, B, H)
    pooled = jnp.mean(enhanced, axis=0)      # (B, H)
    logits = []
    for i in range(3):
        h1 = pooled @ P['w1'][i] + P['b1'][i]
        h1 = _layernorm(h1, P['g1'][i], P['beta1'][i])
        h1 = _gelu(h1, erf)
        logits.append(h1 @ P['w2'][i] + P['b2'][i])
    return tuple(logits)


if __name__ == "__main__":
    key = jax.random.PRNGKey(0)
    kx, kp = jax.random.split(key)
    B, H, C = 2, 128, 5   # small hidden (divisible by 8 heads) instead of 768

    params = init_params(kp, H=H, C=C)

    # (T, time_block) cases: single masked slab / 3 serial slabs / 2 slabs on a
    # size-2 "parallel" axis (v7x megacore) / multi-chunk inner loop.
    cases = [(20, None), (20, 8), (20, 10), (80, None)]
    for T, tb in cases:
        hs = jax.random.normal(jax.random.fold_in(kx, T), (B, T, H), dtype=jnp.float32)
        refs = reference_forward(hs, params)
        outs = jax.block_until_ready(
            timbre_classifier_forward(hs, params, time_block=tb))
        for o, r in zip(outs, refs):
            assert o.shape == (B, C), o.shape
            assert jnp.allclose(o, r, atol=5e-3, rtol=5e-3), (T, tb, o - r)

    # bf16 MXU-operand fast path (v6e/v7x): bf16 weight rounding dominates the
    # error, so validate against a looser tolerance.
    hs = jax.random.normal(kx, (B, 32, H), dtype=jnp.float32)
    refs = reference_forward(hs, params)
    outs = jax.block_until_ready(
        timbre_classifier_forward(hs, params, use_bf16=True))
    for o, r in zip(outs, refs):
        assert o.shape == (B, C), o.shape
        assert jnp.allclose(o, r, atol=5e-2, rtol=5e-2), (o - r)

    print("KERNEL_OK")
</pallas_src>

<mosaic_0001>
module attributes {stable_mosaic.version = 11 : i64} {
  func.func @kernel(%arg0: i32, %arg1: i32, %arg2: memref<2x24x128xf32, #tpu.memory_space<vmem>>, %arg3: memref<128x384xf32, #tpu.memory_space<vmem>>, %arg4: memref<1x384xf32, #tpu.memory_space<vmem>>, %arg5: memref<128x8xf32, #tpu.memory_space<vmem>>, %arg6: memref<8x128xf32, #tpu.memory_space<vmem>>, %arg7: memref<128x128xf32, #tpu.memory_space<vmem>>, %arg8: memref<3x128xf32, #tpu.memory_space<vmem>>, %arg9: memref<1x2x128xf32, #tpu.memory_space<vmem>>, %arg10: memref<48x384xf32, #tpu.memory_space<vmem>>) attributes {dimension_semantics = [#tpu.dimension_semantics<parallel>, #tpu.dimension_semantics<arbitrary>], iteration_bounds = array<i64: 1, 1>, scalar_prefetch = 0 : i64, scratch_operands = 1 : i64, tpu.core_type = #tpu.core_type<tc>, window_params = [{transform_indices = @transform_0, window_bounds = array<i64: 2, 24, 128>}, {pipeline_mode = #tpu.pipeline_mode<synchronous>, transform_indices = @transform_1, window_bounds = array<i64: 128, 384>}, {pipeline_mode = #tpu.pipeline_mode<synchronous>, transform_indices = @transform_2, window_bounds = array<i64: 1, 384>}, {pipeline_mode = #tpu.pipeline_mode<synchronous>, transform_indices = @transform_3, window_bounds = array<i64: 128, 8>}, {pipeline_mode = #tpu.pipeline_mode<synchronous>, transform_indices = @transform_4, window_bounds = array<i64: 8, 128>}, {pipeline_mode = #tpu.pipeline_mode<synchronous>, transform_indices = @transform_5, window_bounds = array<i64: 128, 128>}, {pipeline_mode = #tpu.pipeline_mode<synchronous>, transform_indices = @transform_6, window_bounds = array<i64: 3, 128>}, {transform_indices = @transform_7, window_bounds = array<i64: 1, 2, 128>}]} {
    %c0_i32 = arith.constant 0 : i32
    %0 = arith.cmpi eq, %arg1, %c0_i32 : i32
    %1 = arith.extui %0 : i1 to i32
    %c0_i32_0 = arith.constant 0 : i32
    %2 = arith.cmpi ne, %1, %c0_i32_0 : i32
    scf.if %2 {
      %cst_96 = arith.constant 0.000000e+00 : f32
      %239 = vector.broadcast %cst_96 : f32 to vector<1x2x128xf32>
      %c0_97 = arith.constant 0 : index
      %c0_98 = arith.constant 0 : index
      %c0_99 = arith.constant 0 : index
      %240 = vector.load %arg9[%c0_97, %c0_98, %c0_99] : memref<1x2x128xf32, #tpu.memory_space<vmem>>, vector<1x2x128xf32>
      tpu.vector_store %arg9[%c0_97, %c0_98, %c0_99], %239 {strides = array<i32>} : memref<1x2x128xf32, #tpu.memory_space<vmem>>, vector<1x2x128xf32>,
    } else {
    }
    %c0 = arith.constant 0 : index
    %c0_1 = arith.constant 0 : index
    %c0_2 = arith.constant 0 : index
    %3 = vector.load %arg2[%c0, %c0_1, %c0_2] : memref<2x24x128xf32, #tpu.memory_space<vmem>>, vector<2x24x128xf32>
    %4 = vector.shape_cast %3 : vector<2x24x128xf32> to vector<48x128xf32>
    %c0_3 = arith.constant 0 : index
    %c0_4 = arith.constant 0 : index
    %5 = vector.load %arg3[%c0_3, %c0_4] : memref<128x384xf32, #tpu.memory_space<vmem>>, vector<128x384xf32>
    %cst = arith.constant dense<0.000000e+00> : vector<48x384xf32>
    %6 = tpu.matmul %4, %5, %cst {dimension_numbers = #tpu.dot_dimension_numbers<[1], [0], [0], [1], [0, 0, 1, 1], [], []>} : vector<48x128xf32>, vector<128x384xf32>, vector<48x384xf32> -> vector<48x384xf32>
    %c0_5 = arith.constant 0 : index
    %c0_6 = arith.constant 0 : index
    %7 = vector.load %arg4[%c0_5, %c0_6] : memref<1x384xf32, #tpu.memory_space<vmem>>, vector<1x384xf32>
    %8 = vector.broadcast %7 : vector<1x384xf32> to vector<48x384xf32>
    %9 = arith.addf %6, %8 : vector<48x384xf32>
    %c0_7 = arith.constant 0 : index
    %c0_8 = arith.constant 0 : index
    %10 = vector.load %arg10[%c0_7, %c0_8] : memref<48x384xf32, #tpu.memory_space<vmem>>, vector<48x384xf32>
    tpu.vector_store %arg10[%c0_7, %c0_8], %9 {strides = array<i32>} : memref<48x384xf32, #tpu.memory_space<vmem>>, vector<48x384xf32>,
    %c1_i32 = arith.constant 1 : i32
    %11 = arith.muli %arg0, %c1_i32 : i32
    %12 = arith.addi %11, %arg1 : i32
    %c24_i32 = arith.constant 24 : i32
    %13 = arith.muli %12, %c24_i32 : i32
    %c0_i32_9 = arith.constant 0 : i32
    %c1_i32_10 = arith.constant 1 : i32
    %14 = arith.muli %c0_i32_9, %c1_i32_10 : i32
    %c0_i32_11 = arith.constant 0 : i32
    %15 = arith.addi %c0_i32_11, %14 : i32
    %c0_12 = arith.constant 0 : index
    %c0_13 = arith.constant 0 : index
    %16 = vector.load %arg5[%c0_12, %c0_13] : memref<128x8xf32, #tpu.memory_space<vmem>>, vector<128x8xf32>
    %c0_14 = arith.constant 0 : index
    %c0_15 = arith.constant 0 : index
    %17 = vector.load %arg6[%c0_14, %c0_15] : memref<8x128xf32, #tpu.memory_space<vmem>>, vector<8x128xf32>
    %c0_16 = arith.constant 0 : index
    %c0_17 = arith.constant 0 : index
    %18 = vector.load %arg8[%c0_16, %c0_17] : memref<3x128xf32, #tpu.memory_space<vmem>>, vector<1x128xf32>
    %c1 = arith.constant 1 : index
    %c0_18 = arith.constant 0 : index
    %19 = vector.load %arg8[%c1, %c0_18] : memref<3x128xf32, #tpu.memory_space<vmem>>, vector<1x128xf32>
    %c2 = arith.constant 2 : index
    %c0_19 = arith.constant 0 : index
    %20 = vector.load %arg8[%c2, %c0_19] : memref<3x128xf32, #tpu.memory_space<vmem>>, vector<1x128xf32>
    %c24_i32_20 = arith.constant 24 : i32
    %21 = arith.muli %15, %c24_i32_20 : i32
    %c0_i32_21 = arith.constant 0 : i32
    %22 = arith.addi %c0_i32_21, %21 : i32
    %23 = tpu.assume_multiple %22, 8 : i32
    %24 = arith.index_cast %23 : i32 to index
    %c0_22 = arith.constant 0 : index
    %25 = vector.load %arg10[%24, %c0_22] : memref<48x384xf32, #tpu.memory_space<vmem>>, vector<24x128xf32>
    %26 = arith.index_cast %23 : i32 to index
    %c128 = arith.constant 128 : index
    %27 = vector.load %arg10[%26, %c128] : memref<48x384xf32, #tpu.memory_space<vmem>>, vector<24x128xf32>
    %28 = arith.index_cast %23 : i32 to index
    %c256 = arith.constant 256 : index
    %29 = vector.load %arg10[%28, %c256] : memref<48x384xf32, #tpu.memory_space<vmem>>, vector<24x128xf32>
    %c24_i32_23 = arith.constant 24 : i32
    %30 = arith.muli %15, %c24_i32_23 : i32
    %c24_i32_24 = arith.constant 24 : i32
    %31 = arith.addi %c24_i32_24, %30 : i32
    %32 = tpu.assume_multiple %31, 8 : i32
    %33 = arith.index_cast %32 : i32 to index
    %c0_25 = arith.constant 0 : index
    %34 = vector.load %arg10[%33, %c0_25] : memref<48x384xf32, #tpu.memory_space<vmem>>, vector<24x128xf32>
    %35 = arith.index_cast %32 : i32 to index
    %c128_26 = arith.constant 128 : index
    %36 = vector.load %arg10[%35, %c128_26] : memref<48x384xf32, #tpu.memory_space<vmem>>, vector<24x128xf32>
    %37 = arith.index_cast %32 : i32 to index
    %c256_27 = arith.constant 256 : index
    %38 = vector.load %arg10[%37, %c256_27] : memref<48x384xf32, #tpu.memory_space<vmem>>, vector<24x128xf32>
    %c24_i32_28 = arith.constant 24 : i32
    %39 = arith.muli %15, %c24_i32_28 : i32
    %40 = arith.addi %13, %39 : i32
    %41 = tpu.iota {dimensions = array<i32: 0>} : vector<24x1xi32>
    %42 = vector.broadcast %40 : i32 to vector<24x1xi32>
    %43 = arith.addi %42, %41 : vector<24x1xi32>
    %c20_i32 = arith.constant 20 : i32
    %44 = vector.broadcast %c20_i32 : i32 to vector<24x1xi32>
    %45 = arith.cmpi slt, %43, %44 : vector<24x1xi32>
    %46 = arith.mulf %25, %27 : vector<24x128xf32>
    %cst_29 = arith.constant dense<0.000000e+00> : vector<24x8xf32>
    %47 = tpu.matmul %46, %16, %cst_29 {dimension_numbers = #tpu.dot_dimension_numbers<[1], [0], [0], [1], [0, 0, 1, 1], [], []>} : vector<24x128xf32>, vector<128x8xf32>, vector<24x8xf32> -> vector<24x8xf32>
    %48 = arith.mulf %25, %36 : vector<24x128xf32>
    %cst_30 = arith.constant dense<0.000000e+00> : vector<24x8xf32>
    %49 = tpu.matmul %48, %16, %cst_30 {dimension_numbers = #tpu.dot_dimension_numbers<[1], [0], [0], [1], [0, 0, 1, 1], [], []>} : vector<24x128xf32>, vector<128x8xf32>, vector<24x8xf32> -> vector<24x8xf32>
    %50 = arith.maximumf %47, %49 : vector<24x8xf32>
    %51 = arith.subf %47, %50 : vector<24x8xf32>
    %52 = math.exp %51 : vector<24x8xf32>
    %53 = arith.subf %49, %50 : vector<24x8xf32>
    %54 = math.exp %53 : vector<24x8xf32>
    %55 = arith.addf %52, %54 : vector<24x8xf32>
    %56 = tpu.reciprocal %55 {approx = true} : vector<24x8xf32> -> vector<24x8xf32>
    %cst_31 = arith.constant 0.000000e+00 : f32
    %57 = vector.broadcast %cst_31 : f32 to vector<24x128xf32>
    %58 = arith.mulf %52, %56 : vector<24x8xf32>
    %cst_32 = arith.constant dense<0.000000e+00> : vector<24x128xf32>
    %59 = tpu.matmul %58, %17, %cst_32 {dimension_numbers = #tpu.dot_dimension_numbers<[1], [0], [0], [1], [0, 0, 1, 1], [], []>} : vector<24x8xf32>, vector<8x128xf32>, vector<24x128xf32> -> vector<24x128xf32>
    %60 = arith.mulf %59, %29 : vector<24x128xf32>
    %61 = arith.addf %57, %60 : vector<24x128xf32>
    %62 = arith.mulf %54, %56 : vector<24x8xf32>
    %cst_33 = arith.constant dense<0.000000e+00> : vector<24x128xf32>
    %63 = tpu.matmul %62, %17, %cst_33 {dimension_numbers = #tpu.dot_dimension_numbers<[1], [0], [0], [1], [0, 0, 1, 1], [], []>} : vector<24x8xf32>, vector<8x128xf32>, vector<24x128xf32> -> vector<24x128xf32>
    %64 = arith.mulf %63, %38 : vector<24x128xf32>
    %65 = arith.addf %61, %64 : vector<24x128xf32>
    %c0_34 = arith.constant 0 : index
    %c0_35 = arith.constant 0 : index
    %66 = vector.load %arg7[%c0_34, %c0_35] : memref<128x128xf32, #tpu.memory_space<vmem>>, vector<128x128xf32>
    %cst_36 = arith.constant dense<0.000000e+00> : vector<24x128xf32>
    %67 = tpu.matmul %65, %66, %cst_36 {dimension_numbers = #tpu.dot_dimension_numbers<[1], [0], [0], [1], [0, 0, 1, 1], [], []>} : vector<24x128xf32>, vector<128x128xf32>, vector<24x128xf32> -> vector<24x128xf32>
    %68 = vector.broadcast %18 : vector<1x128xf32> to vector<24x128xf32>
    %69 = arith.addf %67, %68 : vector<24x128xf32>
    %cst_37 = arith.constant dense<0.000000e+00> : vector<24xf32>
    %70 = vector.multi_reduction <add>, %69, %cst_37 [1] : vector<24x128xf32> to vector<24xf32>
    %71 = vector.shape_cast %70 : vector<24xf32> to vector<24x1xf32>
    %cst_38 = arith.constant 1.280000e+02 : f32
    %72 = vector.broadcast %cst_38 : f32 to vector<24x1xf32>
    %73 = arith.divf %71, %72 : vector<24x1xf32>
    %74 = vector.broadcast %73 : vector<24x1xf32> to vector<24x128xf32>
    %75 = arith.subf %69, %74 : vector<24x128xf32>
    %76 = vector.broadcast %73 : vector<24x1xf32> to vector<24x128xf32>
    %77 = arith.subf %69, %76 : vector<24x128xf32>
    %78 = arith.mulf %75, %77 : vector<24x128xf32>
    %cst_39 = arith.constant dense<0.000000e+00> : vector<24xf32>
    %79 = vector.multi_reduction <add>, %78, %cst_39 [1] : vector<24x128xf32> to vector<24xf32>
    %80 = vector.shape_cast %79 : vector<24xf32> to vector<24x1xf32>
    %cst_40 = arith.constant 1.280000e+02 : f32
    %81 = vector.broadcast %cst_40 : f32 to vector<24x1xf32>
    %82 = arith.divf %80, %81 : vector<24x1xf32>
    %83 = vector.broadcast %73 : vector<24x1xf32> to vector<24x128xf32>
    %84 = arith.subf %69, %83 : vector<24x128xf32>
    %cst_41 = arith.constant 9.99999974E-6 : f32
    %85 = vector.broadcast %cst_41 : f32 to vector<24x1xf32>
    %86 = arith.addf %82, %85 : vector<24x1xf32>
    %87 = math.rsqrt %86 : vector<24x1xf32>
    %88 = vector.broadcast %87 : vector<24x1xf32> to vector<24x128xf32>
    %89 = arith.mulf %84, %88 : vector<24x128xf32>
    %90 = vector.broadcast %19 : vector<1x128xf32> to vector<24x128xf32>
    %91 = arith.mulf %89, %90 : vector<24x128xf32>
    %92 = vector.broadcast %20 : vector<1x128xf32> to vector<24x128xf32>
    %93 = arith.addf %91, %92 : vector<24x128xf32>
    %cst_42 = arith.constant 5.000000e-01 : f32
    %94 = vector.broadcast %cst_42 : f32 to vector<24x128xf32>
    %95 = arith.mulf %94, %93 : vector<24x128xf32>
    %cst_43 = arith.constant 1.41421354 : f32
    %96 = vector.broadcast %cst_43 : f32 to vector<24x128xf32>
    %97 = arith.divf %93, %96 : vector<24x128xf32>
    %cst_44 = arith.constant 0.000000e+00 : f32
    %98 = vector.broadcast %cst_44 : f32 to vector<24x128xf32>
    %99 = arith.cmpf oge, %97, %98 : vector<24x128xf32>
    %cst_45 = arith.constant 1.000000e+00 : f32
    %cst_46 = arith.constant -1.000000e+00 : f32
    %100 = vector.broadcast %cst_45 : f32 to vector<24x128xf32>
    %101 = vector.broadcast %cst_46 : f32 to vector<24x128xf32>
    %102 = arith.select %99, %100, %101 : vector<24x128xi1>, vector<24x128xf32>
    %103 = math.absf %97 : vector<24x128xf32>
    %cst_47 = arith.constant 0.327591091 : f32
    %104 = vector.broadcast %cst_47 : f32 to vector<24x128xf32>
    %105 = arith.mulf %104, %103 : vector<24x128xf32>
    %cst_48 = arith.constant 1.000000e+00 : f32
    %106 = vector.broadcast %cst_48 : f32 to vector<24x128xf32>
    %107 = arith.addf %106, %105 : vector<24x128xf32>
    %108 = tpu.reciprocal %107 {approx = true} : vector<24x128xf32> -> vector<24x128xf32>
    %cst_49 = arith.constant 1.06140542 : f32
    %109 = vector.broadcast %cst_49 : f32 to vector<24x128xf32>
    %110 = arith.mulf %109, %108 : vector<24x128xf32>
    %cst_50 = arith.constant -1.45315206 : f32
    %111 = vector.broadcast %cst_50 : f32 to vector<24x128xf32>
    %112 = arith.addf %110, %111 : vector<24x128xf32>
    %113 = arith.mulf %112, %108 : vector<24x128xf32>
    %cst_51 = arith.constant 1.42141378 : f32
    %114 = vector.broadcast %cst_51 : f32 to vector<24x128xf32>
    %115 = arith.addf %113, %114 : vector<24x128xf32>
    %116 = arith.mulf %115, %108 : vector<24x128xf32>
    %cst_52 = arith.constant -0.284496725 : f32
    %117 = vector.broadcast %cst_52 : f32 to vector<24x128xf32>
    %118 = arith.addf %116, %117 : vector<24x128xf32>
    %119 = arith.mulf %118, %108 : vector<24x128xf32>
    %cst_53 = arith.constant 0.254829586 : f32
    %120 = vector.broadcast %cst_53 : f32 to vector<24x128xf32>
    %121 = arith.addf %119, %120 : vector<24x128xf32>
    %122 = arith.mulf %121, %108 : vector<24x128xf32>
    %cst_54 = arith.constant 0.000000e+00 : f32
    %123 = vector.broadcast %cst_54 : f32 to vector<24x128xf32>
    %124 = arith.subf %123, %103 : vector<24x128xf32>
    %125 = arith.mulf %124, %103 : vector<24x128xf32>
    %126 = math.exp %125 : vector<24x128xf32>
    %127 = arith.mulf %122, %126 : vector<24x128xf32>
    %cst_55 = arith.constant 1.000000e+00 : f32
    %128 = vector.broadcast %cst_55 : f32 to vector<24x128xf32>
    %129 = arith.subf %128, %127 : vector<24x128xf32>
    %130 = arith.mulf %102, %129 : vector<24x128xf32>
    %cst_56 = arith.constant 1.000000e+00 : f32
    %131 = vector.broadcast %cst_56 : f32 to vector<24x128xf32>
    %132 = arith.addf %131, %130 : vector<24x128xf32>
    %133 = arith.mulf %95, %132 : vector<24x128xf32>
    %cst_57 = arith.constant 0.000000e+00 : f32
    %134 = vector.shape_cast %45 : vector<24x1xi1> to vector<24x1xi1>
    %135 = vector.broadcast %134 : vector<24x1xi1> to vector<24x128xi1>
    %136 = vector.broadcast %cst_57 : f32 to vector<24x128xf32>
    %137 = arith.select %135, %133, %136 : vector<24x128xi1>, vector<24x128xf32>
    %cst_58 = arith.constant dense<0.000000e+00> : vector<128xf32>
    %138 = vector.multi_reduction <add>, %137, %cst_58 [0] : vector<24x128xf32> to vector<128xf32>
    %139 = vector.shape_cast %138 : vector<128xf32> to vector<1x128xf32>
    %140 = arith.mulf %34, %27 : vector<24x128xf32>
    %cst_59 = arith.constant dense<0.000000e+00> : vector<24x8xf32>
    %141 = tpu.matmul %140, %16, %cst_59 {dimension_numbers = #tpu.dot_dimension_numbers<[1], [0], [0], [1], [0, 0, 1, 1], [], []>} : vector<24x128xf32>, vector<128x8xf32>, vector<24x8xf32> -> vector<24x8xf32>
    %142 = arith.mulf %34, %36 : vector<24x128xf32>
    %cst_60 = arith.constant dense<0.000000e+00> : vector<24x8xf32>
    %143 = tpu.matmul %142, %16, %cst_60 {dimension_numbers = #tpu.dot_dimension_numbers<[1], [0], [0], [1], [0, 0, 1, 1], [], []>} : vector<24x128xf32>, vector<128x8xf32>, vector<24x8xf32> -> vector<24x8xf32>
    %144 = arith.maximumf %141, %143 : vector<24x8xf32>
    %145 = arith.subf %141, %144 : vector<24x8xf32>
    %146 = math.exp %145 : vector<24x8xf32>
    %147 = arith.subf %143, %144 : vector<24x8xf32>
    %148 = math.exp %147 : vector<24x8xf32>
    %149 = arith.addf %146, %148 : vector<24x8xf32>
    %150 = tpu.reciprocal %149 {approx = true} : vector<24x8xf32> -> vector<24x8xf32>
    %cst_61 = arith.constant 0.000000e+00 : f32
    %151 = vector.broadcast %cst_61 : f32 to vector<24x128xf32>
    %152 = arith.mulf %146, %150 : vector<24x8xf32>
    %cst_62 = arith.constant dense<0.000000e+00> : vector<24x128xf32>
    %153 = tpu.matmul %152, %17, %cst_62 {dimension_numbers = #tpu.dot_dimension_numbers<[1], [0], [0], [1], [0, 0, 1, 1], [], []>} : vector<24x8xf32>, vector<8x128xf32>, vector<24x128xf32> -> vector<24x128xf32>
    %154 = arith.mulf %153, %29 : vector<24x128xf32>
    %155 = arith.addf %151, %154 : vector<24x128xf32>
    %156 = arith.mulf %148, %150 : vector<24x8xf32>
    %cst_63 = arith.constant dense<0.000000e+00> : vector<24x128xf32>
    %157 = tpu.matmul %156, %17, %cst_63 {dimension_numbers = #tpu.dot_dimension_numbers<[1], [0], [0], [1], [0, 0, 1, 1], [], []>} : vector<24x8xf32>, vector<8x128xf32>, vector<24x128xf32> -> vector<24x128xf32>
    %158 = arith.mulf %157, %38 : vector<24x128xf32>
    %159 = arith.addf %155, %158 : vector<24x128xf32>
    %c0_64 = arith.constant 0 : index
    %c0_65 = arith.constant 0 : index
    %160 = vector.load %arg7[%c0_64, %c0_65] : memref<128x128xf32, #tpu.memory_space<vmem>>, vector<128x128xf32>
    %cst_66 = arith.constant dense<0.000000e+00> : vector<24x128xf32>
    %161 = tpu.matmul %159, %160, %cst_66 {dimension_numbers = #tpu.dot_dimension_numbers<[1], [0], [0], [1], [0, 0, 1, 1], [], []>} : vector<24x128xf32>, vector<128x128xf32>, vector<24x128xf32> -> vector<24x128xf32>
    %162 = vector.broadcast %18 : vector<1x128xf32> to vector<24x128xf32>
    %163 = arith.addf %161, %162 : vector<24x128xf32>
    %cst_67 = arith.constant dense<0.000000e+00> : vector<24xf32>
    %164 = vector.multi_reduction <add>, %163, %cst_67 [1] : vector<24x128xf32> to vector<24xf32>
    %165 = vector.shape_cast %164 : vector<24xf32> to vector<24x1xf32>
    %cst_68 = arith.constant 1.280000e+02 : f32
    %166 = vector.broadcast %cst_68 : f32 to vector<24x1xf32>
    %167 = arith.divf %165, %166 : vector<24x1xf32>
    %168 = vector.broadcast %167 : vector<24x1xf32> to vector<24x128xf32>
    %169 = arith.subf %163, %168 : vector<24x128xf32>
    %170 = vector.broadcast %167 : vector<24x1xf32> to vector<24x128xf32>
    %171 = arith.subf %163, %170 : vector<24x128xf32>
    %172 = arith.mulf %169, %171 : vector<24x128xf32>
    %cst_69 = arith.constant dense<0.000000e+00> : vector<24xf32>
    %173 = vector.multi_reduction <add>, %172, %cst_69 [1] : vector<24x128xf32> to vector<24xf32>
    %174 = vector.shape_cast %173 : vector<24xf32> to vector<24x1xf32>
    %cst_70 = arith.constant 1.280000e+02 : f32
    %175 = vector.broadcast %cst_70 : f32 to vector<24x1xf32>
    %176 = arith.divf %174, %175 : vector<24x1xf32>
    %177 = vector.broadcast %167 : vector<24x1xf32> to vector<24x128xf32>
    %178 = arith.subf %163, %177 : vector<24x128xf32>
    %cst_71 = arith.constant 9.99999974E-6 : f32
    %179 = vector.broadcast %cst_71 : f32 to vector<24x1xf32>
    %180 = arith.addf %176, %179 : vector<24x1xf32>
    %181 = math.rsqrt %180 : vector<24x1xf32>
    %182 = vector.broadcast %181 : vector<24x1xf32> to vector<24x128xf32>
    %183 = arith.mulf %178, %182 : vector<24x128xf32>
    %184 = vector.broadcast %19 : vector<1x128xf32> to vector<24x128xf32>
    %185 = arith.mulf %183, %184 : vector<24x128xf32>
    %186 = vector.broadcast %20 : vector<1x128xf32> to vector<24x128xf32>
    %187 = arith.addf %185, %186 : vector<24x128xf32>
    %cst_72 = arith.constant 5.000000e-01 : f32
    %188 = vector.broadcast %cst_72 : f32 to vector<24x128xf32>
    %189 = arith.mulf %188, %187 : vector<24x128xf32>
    %cst_73 = arith.constant 1.41421354 : f32
    %190 = vector.broadcast %cst_73 : f32 to vector<24x128xf32>
    %191 = arith.divf %187, %190 : vector<24x128xf32>
    %cst_74 = arith.constant 0.000000e+00 : f32
    %192 = vector.broadcast %cst_74 : f32 to vector<24x128xf32>
    %193 = arith.cmpf oge, %191, %192 : vector<24x128xf32>
    %cst_75 = arith.constant 1.000000e+00 : f32
    %cst_76 = arith.constant -1.000000e+00 : f32
    %194 = vector.broadcast %cst_75 : f32 to vector<24x128xf32>
    %195 = vector.broadcast %cst_76 : f32 to vector<24x128xf32>
    %196 = arith.select %193, %194, %195 : vector<24x128xi1>, vector<24x128xf32>
    %197 = math.absf %191 : vector<24x128xf32>
    %cst_77 = arith.constant 0.327591091 : f32
    %198 = vector.broadcast %cst_77 : f32 to vector<24x128xf32>
    %199 = arith.mulf %198, %197 : vector<24x128xf32>
    %cst_78 = arith.constant 1.000000e+00 : f32
    %200 = vector.broadcast %cst_78 : f32 to vector<24x128xf32>
    %201 = arith.addf %200, %199 : vector<24x128xf32>
    %202 = tpu.reciprocal %201 {approx = true} : vector<24x128xf32> -> vector<24x128xf32>
    %cst_79 = arith.constant 1.06140542 : f32
    %203 = vector.broadcast %cst_79 : f32 to vector<24x128xf32>
    %204 = arith.mulf %203, %202 : vector<24x128xf32>
    %cst_80 = arith.constant -1.45315206 : f32
    %205 = vector.broadcast %cst_80 : f32 to vector<24x128xf32>
    %206 = arith.addf %204, %205 : vector<24x128xf32>
    %207 = arith.mulf %206, %202 : vector<24x128xf32>
    %cst_81 = arith.constant 1.42141378 : f32
    %208 = vector.broadcast %cst_81 : f32 to vector<24x128xf32>
    %209 = arith.addf %207, %208 : vector<24x128xf32>
    %210 = arith.mulf %209, %202 : vector<24x128xf32>
    %cst_82 = arith.constant -0.284496725 : f32
    %211 = vector.broadcast %cst_82 : f32 to vector<24x128xf32>
    %212 = arith.addf %210, %211 : vector<24x128xf32>
    %213 = arith.mulf %212, %202 : vector<24x128xf32>
    %cst_83 = arith.constant 0.254829586 : f32
    %214 = vector.broadcast %cst_83 : f32 to vector<24x128xf32>
    %215 = arith.addf %213, %214 : vector<24x128xf32>
    %216 = arith.mulf %215, %202 : vector<24x128xf32>
    %cst_84 = arith.constant 0.000000e+00 : f32
    %217 = vector.broadcast %cst_84 : f32 to vector<24x128xf32>
    %218 = arith.subf %217, %197 : vector<24x128xf32>
    %219 = arith.mulf %218, %197 : vector<24x128xf32>
    %220 = math.exp %219 : vector<24x128xf32>
    %221 = arith.mulf %216, %220 : vector<24x128xf32>
    %cst_85 = arith.constant 1.000000e+00 : f32
    %222 = vector.broadcast %cst_85 : f32 to vector<24x128xf32>
    %223 = arith.subf %222, %221 : vector<24x128xf32>
    %224 = arith.mulf %196, %223 : vector<24x128xf32>
    %cst_86 = arith.constant 1.000000e+00 : f32
    %225 = vector.broadcast %cst_86 : f32 to vector<24x128xf32>
    %226 = arith.addf %225, %224 : vector<24x128xf32>
    %227 = arith.mulf %189, %226 : vector<24x128xf32>
    %cst_87 = arith.constant 0.000000e+00 : f32
    %228 = vector.shape_cast %45 : vector<24x1xi1> to vector<24x1xi1>
    %229 = vector.broadcast %228 : vector<24x1xi1> to vector<24x128xi1>
    %230 = vector.broadcast %cst_87 : f32 to vector<24x128xf32>
    %231 = arith.select %229, %227, %230 : vector<24x128xi1>, vector<24x128xf32>
    %cst_88 = arith.constant dense<0.000000e+00> : vector<128xf32>
    %232 = vector.multi_reduction <add>, %231, %cst_88 [0] : vector<24x128xf32> to vector<128xf32>
    %233 = vector.shape_cast %232 : vector<128xf32> to vector<1x128xf32>
    %c0_89 = arith.constant 0 : index
    %c0_90 = arith.constant 0 : index
    %c0_91 = arith.constant 0 : index
    %234 = vector.load %arg9[%c0_89, %c0_90, %c0_91] : memref<1x2x128xf32, #tpu.memory_space<vmem>>, vector<1x2x128xf32>
    %235 = tpu.concatenate %139, %233 in 0 : vector<1x128xf32>, vector<1x128xf32> -> vector<2x128xf32>
    %236 = vector.shape_cast %235 : vector<2x128xf32> to vector<1x2x128xf32>
    %237 = arith.addf %234, %236 : vector<1x2x128xf32>
    %c0_92 = arith.constant 0 : index
    %c0_93 = arith.constant 0 : index
    %c0_94 = arith.constant 0 : index
    %238 = vector.load %arg9[%c0_92, %c0_93, %c0_94] : memref<1x2x128xf32, #tpu.memory_space<vmem>>, vector<1x2x128xf32>
    tpu.vector_store %arg9[%c0_92, %c0_93, %c0_94], %237 {strides = array<i32>} : memref<1x2x128xf32, #tpu.memory_space<vmem>>, vector<1x2x128xf32>,
    %c1_i32_95 = arith.constant 1 : i32
    return
  }
  func.func @transform_0(%arg0: i32, %arg1: i32) -> (i32, i32, i32) {
    %c1_i32 = arith.constant 1 : i32
    %0 = arith.muli %arg0, %c1_i32 : i32
    %1 = arith.addi %0, %arg1 : i32
    %c0_i32 = arith.constant 0 : i32
    %c0_i32_0 = arith.constant 0 : i32
    %c0_i32_1 = arith.constant 0 : i32
    return %c0_i32, %1, %c0_i32_0 : i32, i32, i32
  }
  func.func @transform_1(%arg0: i32, %arg1: i32) -> (i32, i32) {
    %c0_i32 = arith.constant 0 : i32
    %c0_i32_0 = arith.constant 0 : i32
    %c0_i32_1 = arith.constant 0 : i32
    return %c0_i32, %c0_i32_0 : i32, i32
  }
  func.func @transform_2(%arg0: i32, %arg1: i32) -> (i32, i32) {
    %c0_i32 = arith.constant 0 : i32
    %c0_i32_0 = arith.constant 0 : i32
    %c0_i32_1 = arith.constant 0 : i32
    return %c0_i32, %c0_i32_0 : i32, i32
  }
  func.func @transform_3(%arg0: i32, %arg1: i32) -> (i32, i32) {
    %c0_i32 = arith.constant 0 : i32
    %c0_i32_0 = arith.constant 0 : i32
    %c0_i32_1 = arith.constant 0 : i32
    return %c0_i32, %c0_i32_0 : i32, i32
  }
  func.func @transform_4(%arg0: i32, %arg1: i32) -> (i32, i32) {
    %c0_i32 = arith.constant 0 : i32
    %c0_i32_0 = arith.constant 0 : i32
    %c0_i32_1 = arith.constant 0 : i32
    return %c0_i32, %c0_i32_0 : i32, i32
  }
  func.func @transform_5(%arg0: i32, %arg1: i32) -> (i32, i32) {
    %c0_i32 = arith.constant 0 : i32
    %c0_i32_0 = arith.constant 0 : i32
    %c0_i32_1 = arith.constant 0 : i32
    return %c0_i32, %c0_i32_0 : i32, i32
  }
  func.func @transform_6(%arg0: i32, %arg1: i32) -> (i32, i32) {
    %c0_i32 = arith.constant 0 : i32
    %c0_i32_0 = arith.constant 0 : i32
    %c0_i32_1 = arith.constant 0 : i32
    return %c0_i32, %c0_i32_0 : i32, i32
  }
  func.func @transform_7(%arg0: i32, %arg1: i32) -> (i32, i32, i32) {
    %c0_i32 = arith.constant 0 : i32
    %c0_i32_0 = arith.constant 0 : i32
    %c0_i32_1 = arith.constant 0 : i32
    return %arg0, %c0_i32, %c0_i32_0 : i32, i32, i32
  }
}

</mosaic_0001>

<llo_original>
// kernel: tpu_custom_call.1
$region0: #{tpu_custom_call.1}
  #allocation0 [shape = 'u32[]', space=smem, size = 0x4, offset = 0x4, fixed_abs, tag = 'smem constant byte address 0x4 - core index']
  #allocation1 [shape = 'u32[144,128]{1,0:T(1,128)}', space=vmem, size = 0x12000, scoped, tag = 'internal scratch']
  #allocation2 [shape = 'f32[48,384]{1,0:T(8,128)}', space=vmem, size = 0x12000, scoped, tag = 'scratch operand']
  %s0 = inlined_call_operand.hbm [shape: f32[2,24,128], index: 0, kind: input, shape index: {}]
  %s1 = inlined_call_operand.hbm [shape: f32[128,384], index: 1, kind: input, shape index: {}]
  %s2 = inlined_call_operand.vmem [shape: f32[1,384], index: 2, kind: input, shape index: {}]
  %s3 = inlined_call_operand.vmem [shape: f32[128,8], index: 3, kind: input, shape index: {}]
  %s4 = inlined_call_operand.vmem [shape: f32[8,128], index: 4, kind: input, shape index: {}]
  %s5 = inlined_call_operand.vmem [shape: f32[128,128], index: 5, kind: input, shape index: {}]
  %s6 = inlined_call_operand.vmem [shape: f32[3,128], index: 6, kind: input, shape index: {}]
  %s7 = inlined_call_operand.hbm [shape: f32[1,2,128], index: 7, kind: output, shape index: {}]
  %s8 = sld [smem:[#allocation0]]
  $region50: #{tpu_custom_call.1} parent=0
    _
  %s10 = ssub.s32 1, %s8
  %s11 = scalar_select 0, %s10, %s8
  $region1: #{tpu_custom_call.1} parent=0
    #allocation3 [shape = 'u8[24576]{0}', space=vmem, size = 0x6000, scoped, tag = 'input window, operand 0, single buffered']
    #allocation4 [shape = 's32[1]{0}', space=sflag, size = 0x4, scoped, tag = 'scoped memory for tpu_custom_call.1']
    #allocation5 [shape = 's32[1]{0}', space=sflag, size = 0x4, scoped, tag = 'scoped memory for tpu_custom_call.1']
    #allocation6 [shape = 'u8[196608]{0}', space=vmem, size = 0x30000, scoped, tag = 'input window, operand 1, single buffered']
    #allocation7 [shape = 's32[1]{0}', space=sflag, size = 0x4, scoped, tag = 'scoped memory for tpu_custom_call.1']
    #allocation8 [shape = 'u8[1024]{0}', space=vmem, size = 0x400, scoped, tag = 'output window, operand 0, single buffered']
    %12 = vsyncpa [#allocation4], 0
    %13 = vsyncpa [#allocation7], 0
    %14 = vsyncpa [#allocation5], 0
    // Predicated region
    $region2: #{tpu_custom_call.1} parent=1 // pred_check
      _
    $region3: #{tpu_custom_call.1} parent=1 // pred_check_branch
      %16 = sbr.rel (0) target = $region5
    $region4: #{tpu_custom_call.1} parent=1 // pred_region
      %s17 = sadd.s32 0, 0
      %s18 = smul.u32 3, %s17
      %s20 = ssub.s32 768, 768
      %21 = vsyncadd [#allocation4], %s20
      %s22 = smul.addr %s18, 128
      %s23 = scalar_lea.hbm %s0, %s22
      %s24 = sshll.u32 [#allocation3], 4
      %s25 = int_to_ptr.vmem [resolvable:$true] %s24
      %30 = dma.hbm_to_vmem [thread:$0]  %s23, 768, %s25, [#allocation4], 128, 128, 8
    $region5: #{tpu_custom_call.1} parent=1 // pred_fallthru
      _
    // Predicated region
    $region6: #{tpu_custom_call.1} parent=1 // pred_check
      _
    $region7: #{tpu_custom_call.1} parent=1 // pred_check_branch
      %32 = sbr.rel (0) target = $region9
    $region8: #{tpu_custom_call.1} parent=1 // pred_region
      %s34 = ssub.s32 6144, 6144
      %35 = vsyncadd [#allocation7], %s34
      %s36 = sshll.u32 [#allocation6], 4
      %s37 = int_to_ptr.vmem [resolvable:$true] %s36
      %42 = dma.hbm_to_vmem [thread:$0]  %s1, 6144, %s37, [#allocation7], 384, 384, 24
    $region9: #{tpu_custom_call.1} parent=1 // pred_fallthru
      _
    // Predicated region
    $region10: #{tpu_custom_call.1} parent=1 // pred_check
      _
    $region11: #{tpu_custom_call.1} parent=1 // pred_check_branch
      %44 = sbr.rel (0) target = $region13
    $region12: #{tpu_custom_call.1} parent=1 // pred_region
      _
    $region13: #{tpu_custom_call.1} parent=1 // pred_fallthru
      _
    // Predicated region
    $region14: #{tpu_custom_call.1} parent=1 // pred_check
      _
    $region15: #{tpu_custom_call.1} parent=1 // pred_check_branch
      %46 = sbr.rel (0) target = $region17
    $region16: #{tpu_custom_call.1} parent=1 // pred_region
      _
    $region17: #{tpu_custom_call.1} parent=1 // pred_fallthru
      _
    // Predicated region
    $region18: #{tpu_custom_call.1} parent=1 // pred_check
      _
    $region19: #{tpu_custom_call.1} parent=1 // pred_check_branch
      %48 = sbr.rel (0) target = $region21
    $region20: #{tpu_custom_call.1} parent=1 // pred_region
      _
    $region21: #{tpu_custom_call.1} parent=1 // pred_fallthru
      _
    // Predicated region
    $region22: #{tpu_custom_call.1} parent=1 // pred_check
      _
    $region23: #{tpu_custom_call.1} parent=1 // pred_check_branch
      %50 = sbr.rel (0) target = $region25
    $region24: #{tpu_custom_call.1} parent=1 // pred_region
      _
    $region25: #{tpu_custom_call.1} parent=1 // pred_fallthru
      _
    // Predicated region
    $region26: #{tpu_custom_call.1} parent=1 // pred_check
      _
    $region27: #{tpu_custom_call.1} parent=1 // pred_check_branch
      %52 = sbr.rel (0) target = $region29
    $region28: #{tpu_custom_call.1} parent=1 // pred_region
      _
    $region29: #{tpu_custom_call.1} parent=1 // pred_fallthru
      _
    // Predicated region
    $region30: #{tpu_custom_call.1} parent=1 // pred_check
      _
    $region31: #{tpu_custom_call.1} parent=1 // pred_check_branch
      %54 = sbr.rel (0) target = $region33
    $region32: #{tpu_custom_call.1} parent=1 // pred_region
      %55 = dma.done [#allocation4], 768
    $region33: #{tpu_custom_call.1} parent=1 // pred_fallthru
      _
    // Predicated region
    $region34: #{tpu_custom_call.1} parent=1 // pred_check
      _
    $region35: #{tpu_custom_call.1} parent=1 // pred_check_branch
      %57 = sbr.rel (0) target = $region37
    $region36: #{tpu_custom_call.1} parent=1 // pred_region
      %58 = dma.done [#allocation7], 6144
    $region37: #{tpu_custom_call.1} parent=1 // pred_fallthru
      _
    %s59 = sadd.s32 0, 0
    %s60 = smul.u32 3, %s59
    %p61 = scmp.eq.s32.totalorder 0, 0
    // Predicated region
    $region38: #{tpu_custom_call.1} parent=1 // pred_check
      %p62 = pneg %p61
    $region39: #{tpu_custom_call.1} parent=1 // pred_check_branch
      %64 = sbr.rel (%p62) target = $region41
    $region40: #{tpu_custom_call.1} parent=1 // pred_region
      %65 = vst [vmem:[#allocation8] sm:$0x3] 0.0
    $region41: #{tpu_custom_call.1} parent=1 // pred_fallthru
      _
    %v66 = vld [vmem:[#allocation3] sm:$0xff]
    %v67 = vld [vmem:[#allocation3 + $0x8] sm:$0xff]
    %v68 = vld [vmem:[#allocation3 + $0x10] sm:$0xff]
    %v69 = vld [vmem:[#allocation3 + $0x18] sm:$0xff]
    %v70 = vld [vmem:[#allocation3 + $0x20] sm:$0xff]
    %v71 = vld [vmem:[#allocation3 + $0x28] sm:$0xff]
    %v72 = vld [vmem:[#allocation6] sm:$0xff]
    %v73 = vld [vmem:[#allocation6 + $0x8] sm:$0xff]
    %v74 = vld [vmem:[#allocation6 + $0x10] sm:$0xff]
    %v75 = vld [vmem:[#allocation6 + $0x18] sm:$0xff]
    %v76 = vld [vmem:[#allocation6 + $0x20] sm:$0xff]
    %v77 = vld [vmem:[#allocation6 + $0x28] sm:$0xff]
    %v78 = vld [vmem:[#allocation6 + $0x30] sm:$0xff]
    %v79 = vld [vmem:[#allocation6 + $0x38] sm:$0xff]
    %v80 = vld [vmem:[#allocation6 + $0x40] sm:$0xff]
    %v81 = vld [vmem:[#allocation6 + $0x48] sm:$0xff]
    %v82 = vld [vmem:[#allocation6 + $0x50] sm:$0xff]
    %v83 = vld [vmem:[#allocation6 + $0x58] sm:$0xff]
    %v84 = vld [vmem:[#allocation6 + $0x60] sm:$0xff]
    %v85 = vld [vmem:[#allocation6 + $0x68] sm:$0xff]
    %v86 = vld [vmem:[#allocation6 + $0x70] sm:$0xff]
    %v87 = vld [vmem:[#allocation6 + $0x78] sm:$0xff]
    %v88 = vld [vmem:[#allocation6 + $0x80] sm:$0xff]
    %v89 = vld [vmem:[#allocation6 + $0x88] sm:$0xff]
    %v90 = vld [vmem:[#allocation6 + $0x90] sm:$0xff]
    %v91 = vld [vmem:[#allocation6 + $0x98] sm:$0xff]
    %v92 = vld [vmem:[#allocation6 + $0xa0] sm:$0xff]
    %v93 = vld [vmem:[#allocation6 + $0xa8] sm:$0xff]
    %v94 = vld [vmem:[#allocation6 + $0xb0] sm:$0xff]
    %v95 = vld [vmem:[#allocation6 + $0xb8] sm:$0xff]
    %v96 = vld [vmem:[#allocation6 + $0xc0] sm:$0xff]
    %v97 = vld [vmem:[#allocation6 + $0xc8] sm:$0xff]
    %v98 = vld [vmem:[#allocation6 + $0xd0] sm:$0xff]
    %v99 = vld [vmem:[#allocation6 + $0xd8] sm:$0xff]
    %v100 = vld [vmem:[#allocation6 + $0xe0] sm:$0xff]
    %v101 = vld [vmem:[#allocation6 + $0xe8] sm:$0xff]
    %v102 = vld [vmem:[#allocation6 + $0xf0] sm:$0xff]
    %v103 = vld [vmem:[#allocation6 + $0xf8] sm:$0xff]
    %v104 = vld [vmem:[#allocation6 + $0x100] sm:$0xff]
    %v105 = vld [vmem:[#allocation6 + $0x108] sm:$0xff]
    %v106 = vld [vmem:[#allocation6 + $0x110] sm:$0xff]
    %v107 = vld [vmem:[#allocation6 + $0x118] sm:$0xff]
    %v108 = vld [vmem:[#allocation6 + $0x120] sm:$0xff]
    %v109 = vld [vmem:[#allocation6 + $0x128] sm:$0xff]
    %v110 = vld [vmem:[#allocation6 + $0x130] sm:$0xff]
    %v111 = vld [vmem:[#allocation6 + $0x138] sm:$0xff]
    %v112 = vld [vmem:[#allocation6 + $0x140] sm:$0xff]
    %v113 = vld [vmem:[#allocation6 + $0x148] sm:$0xff]
    %v114 = vld [vmem:[#allocation6 + $0x150] sm:$0xff]
    %v115 = vld [vmem:[#allocation6 + $0x158] sm:$0xff]
    %v116 = vld [vmem:[#allocation6 + $0x160] sm:$0xff]
    %v117 = vld [vmem:[#allocation6 + $0x168] sm:$0xff]
    %v118 = vld [vmem:[#allocation6 + $0x170] sm:$0xff]
    %v119 = vld [vmem:[#allocation6 + $0x178] sm:$0xff]
    %v120 = vld [vmem:[%s2] sm:$0x7]
    %v122 = vlaneseq
    %v123 = vshrl.u32 %v122, 7
    %v124 = vsub.s32 0, %v123
    %v125 = vrot.slane %v120, %v124
    %v126 = vlaneseq
    %v127 = vshrl.u32 %v126, 7
    %v128 = vsub.s32 1, %v127
    %v129 = vrot.slane %v120, %v128
    %v130 = vlaneseq
    %v131 = vshrl.u32 %v130, 7
    %v132 = vsub.s32 2, %v131
    %v133 = vrot.slane %v120, %v132
    %137 = vmatprep.subr.mxu0 %v73
    %138 = vmatpush1.msra.mxu0 %v72
    %139 = vmatprep.subr.mxu0 %v76
    %140 = vmatpush1.msra.mxu0 %v75
    %141 = vmatprep.subr.mxu0 %v79
    %142 = vmatpush1.msra.mxu0 %v78
    %143 = vmatprep.subr.mxu0 %v82
    %144 = vmatpush1.msra.mxu0 %v81
    %145 = vmatprep.subr.mxu0 %v85
    %146 = vmatpush1.msra.mxu0 %v84
    %147 = vmatprep.subr.mxu0 %v88
    %148 = vmatpush1.msra.mxu0 %v87
    %149 = vmatprep.subr.mxu0 %v91
    %150 = vmatpush1.msra.mxu0 %v90
    %151 = vmatprep.subr.mxu0 %v94
    %152 = vmatpush1.msra.mxu0 %v93
    %153 = vmatprep.subr.mxu0 %v97
    %154 = vmatpush1.msra.mxu0 %v96
    %155 = vmatprep.subr.mxu0 %v100
    %156 = vmatpush1.msra.mxu0 %v99
    %157 = vmatprep.subr.mxu0 %v103
    %158 = vmatpush1.msra.mxu0 %v102
    %159 = vmatprep.subr.mxu0 %v106
    %160 = vmatpush1.msra.mxu0 %v105
    %161 = vmatprep.subr.mxu0 %v109
    %162 = vmatpush1.msra.mxu0 %v108
    %163 = vmatprep.subr.mxu0 %v112
    %164 = vmatpush1.msra.mxu0 %v111
    %165 = vmatprep.subr.mxu0 %v115
    %166 = vmatpush1.msra.mxu0 %v114
    %167 = vmatprep.subr.mxu0 %v118
    %168 = vmatpush1.msra.mxu0 %v117
    %169 = vmatprep.subr.mxu0 0.0
    %170 = vmatpush1.msra.mxu0 0.0
    %171 = vmatprep.subr.mxu0 0.0
    %172 = vmatpush1.msra.mxu0 0.0
    %173 = vmatprep.subr.mxu0 0.0
    %174 = vmatpush1.msra.mxu0 0.0
    %175 = vmatprep.subr.mxu0 0.0
    %176 = vmatpush1.msra.mxu0 0.0
    %177 = vmatprep.subr.mxu0 0.0
    %178 = vmatpush1.msra.mxu0 0.0
    %179 = vmatprep.subr.mxu0 0.0
    %180 = vmatpush1.msra.mxu0 0.0
    %181 = vmatprep.subr.mxu0 0.0
    %182 = vmatpush1.msra.mxu0 0.0
    %183 = vmatprep.subr.mxu0 0.0
    %184 = vmatpush1.msra.mxu0 0.0
    %185 = vmatprep.subr.mxu0 0.0
    %186 = vmatpush1.msra.mxu0 0.0
    %187 = vmatprep.subr.mxu0 0.0
    %188 = vmatpush1.msra.mxu0 0.0
    %189 = vmatprep.subr.mxu0 0.0
    %190 = vmatpush1.msra.mxu0 0.0
    %191 = vmatprep.subr.mxu0 0.0
    %192 = vmatpush1.msra.mxu0 0.0
    %193 = vmatprep.subr.mxu0 0.0
    %194 = vmatpush1.msra.mxu0 0.0
    %195 = vmatprep.subr.mxu0 0.0
    %196 = vmatpush1.msra.mxu0 0.0
    %197 = vmatprep.subr.mxu0 0.0
    %198 = vmatpush1.msra.mxu0 0.0
    %199 = vmatprep.subr.mxu0 0.0
    %200 = vmatpush1.msra.mxu0 0.0
    %201 = vmatprep.mubr.f32.mxu0 0.0
    %202 = vmatmul.mubr.f32.gmra.mrb[0].mxu0 %v66
    %v203 = vpop.f32.mrb[0].mxu0
    %v204 = vadd.f32 %v125, %v203
    %v205 = vpop.f32.mrb[0].mxu0
    %v206 = vadd.f32 %v129, %v205
    %207 = vmatprep.mubr.f32.mxu0 0.0
    %208 = vmatmul.mubr.f32.gmra.mrb[0].mxu0 %v67
    %v209 = vpop.f32.mrb[0].mxu0
    %v210 = vadd.f32 %v125, %v209
    %v211 = vpop.f32.mrb[0].mxu0
    %v212 = vadd.f32 %v129, %v211
    %213 = vmatprep.mubr.f32.mxu0 0.0
    %214 = vmatmul.mubr.f32.gmra.mrb[0].mxu0 %v68
    %v215 = vpop.f32.mrb[0].mxu0
    %v216 = vadd.f32 %v125, %v215
    %v217 = vpop.f32.mrb[0].mxu0
    %v218 = vadd.f32 %v129, %v217
    %219 = vmatprep.mubr.f32.mxu0 0.0
    %220 = vmatmul.mubr.f32.gmra.mrb[0].mxu0 %v69
    %v221 = vpop.f32.mrb[0].mxu0
    %v222 = vadd.f32 %v125, %v221
    %v223 = vpop.f32.mrb[0].mxu0
    %v224 = vadd.f32 %v129, %v223
    %225 = vmatprep.mubr.f32.mxu0 0.0
    %226 = vmatmul.mubr.f32.gmra.mrb[0].mxu0 %v70
    %v227 = vpop.f32.mrb[0].mxu0
    %v228 = vadd.f32 %v125, %v227
    %v229 = vpop.f32.mrb[0].mxu0
    %v230 = vadd.f32 %v129, %v229
    %231 = vmatprep.mubr.f32.mxu0 0.0
    %232 = vmatmul.mubr.f32.gmra.mrb[0].mxu0 %v71
    %v233 = vpop.f32.mrb[0].mxu0
    %v234 = vadd.f32 %v125, %v233
    %v235 = vpop.f32.mrb[0].mxu0
    %v236 = vadd.f32 %v129, %v235
    %237 = vdwg.mxu0
    %238 = vmatprep.subr.mxu0 0.0
    %239 = vmatpush1.msra.mxu0 %v74
    %240 = vmatprep.subr.mxu0 0.0
    %241 = vmatpush1.msra.mxu0 %v77
    %242 = vmatprep.subr.mxu0 0.0
    %243 = vmatpush1.msra.mxu0 %v80
    %244 = vmatprep.subr.mxu0 0.0
    %245 = vmatpush1.msra.mxu0 %v83
    %246 = vmatprep.subr.mxu0 0.0
    %247 = vmatpush1.msra.mxu0 %v86
    %248 = vmatprep.subr.mxu0 0.0
    %249 = vmatpush1.msra.mxu0 %v89
    %250 = vmatprep.subr.mxu0 0.0
    %251 = vmatpush1.msra.mxu0 %v92
    %252 = vmatprep.subr.mxu0 0.0
    %253 = vmatpush1.msra.mxu0 %v95
    %254 = vmatprep.subr.mxu0 0.0
    %255 = vmatpush1.msra.mxu0 %v98
    %256 = vmatprep.subr.mxu0 0.0
    %257 = vmatpush1.msra.mxu0 %v101
    %258 = vmatprep.subr.mxu0 0.0
    %259 = vmatpush1.msra.mxu0 %v104
    %260 = vmatprep.subr.mxu0 0.0
    %261 = vmatpush1.msra.mxu0 %v107
    %262 = vmatprep.subr.mxu0 0.0
    %263 = vmatpush1.msra.mxu0 %v110
    %264 = vmatprep.subr.mxu0 0.0
    %265 = vmatpush1.msra.mxu0 %v113
    %266 = vmatprep.subr.mxu0 0.0
    %267 = vmatpush1.msra.mxu0 %v116
    %268 = vmatprep.subr.mxu0 0.0
    %269 = vmatpush1.msra.mxu0 %v119
    %270 = vmatprep.subr.mxu0 0.0
    %271 = vmatpush1.msra.mxu0 0.0
    %272 = vmatprep.subr.mxu0 0.0
    %273 = vmatpush1.msra.mxu0 0.0
    %274 = vmatprep.subr.mxu0 0.0
    %275 = vmatpush1.msra.mxu0 0.0
    %276 = vmatprep.subr.mxu0 0.0
    %277 = vmatpush1.msra.mxu0 0.0
    %278 = vmatprep.subr.mxu0 0.0
    %279 = vmatpush1.msra.mxu0 0.0
    %280 = vmatprep.subr.mxu0 0.0
    %281 = vmatpush1.msra.mxu0 0.0
    %282 = vmatprep.subr.mxu0 0.0
    %283 = vmatpush1.msra.mxu0 0.0
    %284 = vmatprep.subr.mxu0 0.0
    %285 = vmatpush1.msra.mxu0 0.0
    %286 = vmatprep.subr.mxu0 0.0
    %287 = vmatpush1.msra.mxu0 0.0
    %288 = vmatprep.subr.mxu0 0.0
    %289 = vmatpush1.msra.mxu0 0.0
    %290 = vmatprep.subr.mxu0 0.0
    %291 = vmatpush1.msra.mxu0 0.0
    %292 = vmatprep.subr.mxu0 0.0
    %293 = vmatpush1.msra.mxu0 0.0
    %294 = vmatprep.subr.mxu0 0.0
    %295 = vmatpush1.msra.mxu0 0.0
    %296 = vmatprep.subr.mxu0 0.0
    %297 = vmatpush1.msra.mxu0 0.0
    %298 = vmatprep.subr.mxu0 0.0
    %299 = vmatpush1.msra.mxu0 0.0
    %300 = vmatprep.subr.mxu0 0.0
    %301 = vmatpush1.msra.mxu0 0.0
    %302 = vmatprep.mubr.f32.mxu0 0.0
    %303 = vmatmul.mubr.f32.gmra.mrb[0].mxu0 %v66
    %v304 = vpop.f32.mrb[0].mxu0
    %v305 = vadd.f32 %v133, %v304
    %v306 = vpop.f32.mrb[0].mxu0
    %307 = vmatprep.mubr.f32.mxu0 0.0
    %308 = vmatmul.mubr.f32.gmra.mrb[0].mxu0 %v67
    %v309 = vpop.f32.mrb[0].mxu0
    %v310 = vadd.f32 %v133, %v309
    %v311 = vpop.f32.mrb[0].mxu0
    %312 = vmatprep.mubr.f32.mxu0 0.0
    %313 = vmatmul.mubr.f32.gmra.mrb[0].mxu0 %v68
    %v314 = vpop.f32.mrb[0].mxu0
    %v315 = vadd.f32 %v133, %v314
    %v316 = vpop.f32.mrb[0].mxu0
    %317 = vmatprep.mubr.f32.mxu0 0.0
    %318 = vmatmul.mubr.f32.gmra.mrb[0].mxu0 %v69
    %v319 = vpop.f32.mrb[0].mxu0
    %v320 = vadd.f32 %v133, %v319
    %v321 = vpop.f32.mrb[0].mxu0
    %322 = vmatprep.mubr.f32.mxu0 0.0
    %323 = vmatmul.mubr.f32.gmra.mrb[0].mxu0 %v70
    %v324 = vpop.f32.mrb[0].mxu0
    %v325 = vadd.f32 %v133, %v324
    %v326 = vpop.f32.mrb[0].mxu0
    %327 = vmatprep.mubr.f32.mxu0 0.0
    %328 = vmatmul.mubr.f32.gmra.mrb[0].mxu0 %v71
    %v329 = vpop.f32.mrb[0].mxu0
    %v330 = vadd.f32 %v133, %v329
    %v331 = vpop.f32.mrb[0].mxu0
    %332 = vdwg.mxu0
    %333 = vst [vmem:[#allocation2] sm:$0xff] %v204
    %334 = vst [vmem:[#allocation2 + $0x8] sm:$0xff] %v206
    %335 = vst [vmem:[#allocation2 + $0x10] sm:$0xff] %v305
    %336 = vst [vmem:[#allocation2 + $0x18] sm:$0xff] %v210
    %337 = vst [vmem:[#allocation2 + $0x20] sm:$0xff] %v212
    %338 = vst [vmem:[#allocation2 + $0x28] sm:$0xff] %v310
    %339 = vst [vmem:[#allocation2 + $0x30] sm:$0xff] %v216
    %340 = vst [vmem:[#allocation2 + $0x38] sm:$0xff] %v218
    %341 = vst [vmem:[#allocation2 + $0x40] sm:$0xff] %v315
    %342 = vst [vmem:[#allocation2 + $0x48] sm:$0xff] %v222
    %343 = vst [vmem:[#allocation2 + $0x50] sm:$0xff] %v224
    %344 = vst [vmem:[#allocation2 + $0x58] sm:$0xff] %v320
    %345 = vst [vmem:[#allocation2 + $0x60] sm:$0xff] %v228
    %346 = vst [vmem:[#allocation2 + $0x68] sm:$0xff] %v230
    %347 = vst [vmem:[#allocation2 + $0x70] sm:$0xff] %v325
    %348 = vst [vmem:[#allocation2 + $0x78] sm:$0xff] %v234
    %349 = vst [vmem:[#allocation2 + $0x80] sm:$0xff] %v236
    %350 = vst [vmem:[#allocation2 + $0x88] sm:$0xff] %v330
    %s351 = sadd.s32 0, 0
    %s352 = smul.u32 %s351, 24
    %v353 = vld [vmem:[%s3] sm:$0xff]
    %v354 = vld [vmem:[%s3 + $0x8] sm:$0xff]
    %v355 = vld [vmem:[%s3 + $0x10] sm:$0xff]
    %v356 = vld [vmem:[%s3 + $0x18] sm:$0xff]
    %v357 = vld [vmem:[%s3 + $0x20] sm:$0xff]
    %v358 = vld [vmem:[%s3 + $0x28] sm:$0xff]
    %v359 = vld [vmem:[%s3 + $0x30] sm:$0xff]
    %v360 = vld [vmem:[%s3 + $0x38] sm:$0xff]
    %v361 = vld [vmem:[%s3 + $0x40] sm:$0xff]
    %v362 = vld [vmem:[%s3 + $0x48] sm:$0xff]
    %v363 = vld [vmem:[%s3 + $0x50] sm:$0xff]
    %v364 = vld [vmem:[%s3 + $0x58] sm:$0xff]
    %v365 = vld [vmem:[%s3 + $0x60] sm:$0xff]
    %v366 = vld [vmem:[%s3 + $0x68] sm:$0xff]
    %v367 = vld [vmem:[%s3 + $0x70] sm:$0xff]
    %v368 = vld [vmem:[%s3 + $0x78] sm:$0xff]
    %v369 = vld [vmem:[%s4] sm:$0xff]
    %v370 = vld [vmem:[%s6] sm:$0x1]
    %v371 = vld [vmem:[%s6 + $0x1] sm:$0x1]
    %v372 = vld [vmem:[%s6 + $0x2] sm:$0x1]
    %s373 = smul.u32 0, 3
    %s374 = smul.addr %s373, 8
    %s375 = scalar_lea.vmem [#allocation2], %s374
    %v376 = vld [vmem:[%s375] sm:$0xff]
    %v377 = vld [vmem:[%s375 + $0x18] sm:$0xff]
    %v378 = vld [vmem:[%s375 + $0x30] sm:$0xff]
    %v379 = vld [vmem:[%s375 + $0x8] sm:$0xff]
    %v380 = vld [vmem:[%s375 + $0x20] sm:$0xff]
    %v381 = vld [vmem:[%s375 + $0x38] sm:$0xff]
    %v382 = vld [vmem:[%s375 + $0x10] sm:$0xff]
    %v383 = vld [vmem:[%s375 + $0x28] sm:$0xff]
    %v384 = vld [vmem:[%s375 + $0x40] sm:$0xff]
    %s385 = smul.u32 3, 3
    %s386 = smul.addr %s385, 8
    %s387 = scalar_lea.vmem [#allocation2], %s386
    %v388 = vld [vmem:[%s387] sm:$0xff]
    %v389 = vld [vmem:[%s387 + $0x18] sm:$0xff]
    %v390 = vld [vmem:[%s387 + $0x30] sm:$0xff]
    %v391 = vld [vmem:[%s387 + $0x8] sm:$0xff]
    %v392 = vld [vmem:[%s387 + $0x20] sm:$0xff]
    %v393 = vld [vmem:[%s387 + $0x38] sm:$0xff]
    %v394 = vld [vmem:[%s387 + $0x10] sm:$0xff]
    %v395 = vld [vmem:[%s387 + $0x28] sm:$0xff]
    %v396 = vld [vmem:[%s387 + $0x40] sm:$0xff]
    %v397 = vlaneseq
    %v398 = vshrl.u32 %v397, 7
    %v399 = vadd.s32 %v398, 8
    %v400 = vadd.s32 %v398, 16
    %v401 = vstv %s352
    %v402 = vadd.s32 %v401, %v398
    %v403 = vadd.s32 %v401, %v399
    %v404 = vadd.s32 %v401, %v400
    %vm405 = vcmp.lt.s32.totalorder %v402, 20
    %vm406 = vcmp.lt.s32.totalorder %v403, 20
    %vm407 = vcmp.lt.s32.totalorder %v404, 20
    %v408 = vmul.f32 %v376, %v379
    %v409 = vmul.f32 %v377, %v380
    %v410 = vmul.f32 %v378, %v381
    %411 = vmatprep.subr.mxu0 0.0
    %412 = vmatpush1.msra.mxu0 %v353
    %413 = vmatprep.subr.mxu0 0.0
    %414 = vmatpush1.msra.mxu0 %v354
    %415 = vmatprep.subr.mxu0 0.0
    %416 = vmatpush1.msra.mxu0 %v355
    %417 = vmatprep.subr.mxu0 0.0
    %418 = vmatpush1.msra.mxu0 %v356
    %419 = vmatprep.subr.mxu0 0.0
    %420 = vmatpush1.msra.mxu0 %v357
    %421 = vmatprep.subr.mxu0 0.0
    %422 = vmatpush1.msra.mxu0 %v358
    %423 = vmatprep.subr.mxu0 0.0
    %424 = vmatpush1.msra.mxu0 %v359
    %425 = vmatprep.subr.mxu0 0.0
    %426 = vmatpush1.msra.mxu0 %v360
    %427 = vmatprep.subr.mxu0 0.0
    %428 = vmatpush1.msra.mxu0 %v361
    %429 = vmatprep.subr.mxu0 0.0
    %430 = vmatpush1.msra.mxu0 %v362
    %431 = vmatprep.subr.mxu0 0.0
    %432 = vmatpush1.msra.mxu0 %v363
    %433 = vmatprep.subr.mxu0 0.0
    %434 = vmatpush1.msra.mxu0 %v364
    %435 = vmatprep.subr.mxu0 0.0
    %436 = vmatpush1.msra.mxu0 %v365
    %437 = vmatprep.subr.mxu0 0.0
    %438 = vmatpush1.msra.mxu0 %v366
    %439 = vmatprep.subr.mxu0 0.0
    %440 = vmatpush1.msra.mxu0 %v367
    %441 = vmatprep.subr.mxu0 0.0
    %442 = vmatpush1.msra.mxu0 %v368
    %443 = vmatprep.subr.mxu0 0.0
    %444 = vmatpush1.msra.mxu0 0.0
    %445 = vmatprep.subr.mxu0 0.0
    %446 = vmatpush1.msra.mxu0 0.0
    %447 = vmatprep.subr.mxu0 0.0
    %448 = vmatpush1.msra.mxu0 0.0
    %449 = vmatprep.subr.mxu0 0.0
    %450 = vmatpush1.msra.mxu0 0.0
    %451 = vmatprep.subr.mxu0 0.0
    %452 = vmatpush1.msra.mxu0 0.0
    %453 = vmatprep.subr.mxu0 0.0
    %454 = vmatpush1.msra.mxu0 0.0
    %455 = vmatprep.subr.mxu0 0.0
    %456 = vmatpush1.msra.mxu0 0.0
    %457 = vmatprep.subr.mxu0 0.0
    %458 = vmatpush1.msra.mxu0 0.0
    %459 = vmatprep.subr.mxu0 0.0
    %460 = vmatpush1.msra.mxu0 0.0
    %461 = vmatprep.subr.mxu0 0.0
    %462 = vmatpush1.msra.mxu0 0.0
    %463 = vmatprep.subr.mxu0 0.0
    %464 = vmatpush1.msra.mxu0 0.0
    %465 = vmatprep.subr.mxu0 0.0
    %466 = vmatpush1.msra.mxu0 0.0
    %467 = vmatprep.subr.mxu0 0.0
    %468 = vmatpush1.msra.mxu0 0.0
    %469 = vmatprep.subr.mxu0 0.0
    %470 = vmatpush1.msra.mxu0 0.0
    %471 = vmatprep.subr.mxu0 0.0
    %472 = vmatpush1.msra.mxu0 0.0
    %473 = vmatprep.subr.mxu0 0.0
    %474 = vmatpush1.msra.mxu0 0.0
    %475 = vmatprep.mubr.f32.mxu0 0.0
    %476 = vmatmul.mubr.f32.gmra.mrb[0].mxu0 %v408
    %v477 = vpop.f32.mrb[0].mxu0
    %v478 = vadd.f32 0.0, %v477
    %v479 = vpop.f32.mrb[0].mxu0
    %480 = vmatprep.mubr.f32.mxu0 0.0
    %481 = vmatmul.mubr.f32.gmra.mrb[0].mxu0 %v409
    %v482 = vpop.f32.mrb[0].mxu0
    %v483 = vadd.f32 0.0, %v482
    %v484 = vpop.f32.mrb[0].mxu0
    %485 = vmatprep.mubr.f32.mxu0 0.0
    %486 = vmatmul.mubr.f32.gmra.mrb[0].mxu0 %v410
    %v487 = vpop.f32.mrb[0].mxu0
    %v488 = vadd.f32 0.0, %v487
    %v489 = vpop.f32.mrb[0].mxu0
    %490 = vdwg.mxu0
    %v491 = vmul.f32 %v376, %v391
    %v492 = vmul.f32 %v377, %v392
    %v493 = vmul.f32 %v378, %v393
    %494 = vmatprep.subr.mxu0 0.0
    %495 = vmatpush1.msra.mxu0 %v353
    %496 = vmatprep.subr.mxu0 0.0
    %497 = vmatpush1.msra.mxu0 %v354
    %498 = vmatprep.subr.mxu0 0.0
    %499 = vmatpush1.msra.mxu0 %v355
    %500 = vmatprep.subr.mxu0 0.0
    %501 = vmatpush1.msra.mxu0 %v356
    %502 = vmatprep.subr.mxu0 0.0
    %503 = vmatpush1.msra.mxu0 %v357
    %504 = vmatprep.subr.mxu0 0.0
    %505 = vmatpush1.msra.mxu0 %v358
    %506 = vmatprep.subr.mxu0 0.0
    %507 = vmatpush1.msra.mxu0 %v359
    %508 = vmatprep.subr.mxu0 0.0
    %509 = vmatpush1.msra.mxu0 %v360
    %510 = vmatprep.subr.mxu0 0.0
    %511 = vmatpush1.msra.mxu0 %v361
    %512 = vmatprep.subr.mxu0 0.0
    %513 = vmatpush1.msra.mxu0 %v362
    %514 = vmatprep.subr.mxu0 0.0
    %515 = vmatpush1.msra.mxu0 %v363
    %516 = vmatprep.subr.mxu0 0.0
    %517 = vmatpush1.msra.mxu0 %v364
    %518 = vmatprep.subr.mxu0 0.0
    %519 = vmatpush1.msra.mxu0 %v365
    %520 = vmatprep.subr.mxu0 0.0
    %521 = vmatpush1.msra.mxu0 %v366
    %522 = vmatprep.subr.mxu0 0.0
    %523 = vmatpush1.msra.mxu0 %v367
    %524 = vmatprep.subr.mxu0 0.0
    %525 = vmatpush1.msra.mxu0 %v368
    %526 = vmatprep.subr.mxu0 0.0
    %527 = vmatpush1.msra.mxu0 0.0
    %528 = vmatprep.subr.mxu0 0.0
    %529 = vmatpush1.msra.mxu0 0.0
    %530 = vmatprep.subr.mxu0 0.0
    %531 = vmatpush1.msra.mxu0 0.0
    %532 = vmatprep.subr.mxu0 0.0
    %533 = vmatpush1.msra.mxu0 0.0
    %534 = vmatprep.subr.mxu0 0.0
    %535 = vmatpush1.msra.mxu0 0.0
    %536 = vmatprep.subr.mxu0 0.0
    %537 = vmatpush1.msra.mxu0 0.0
    %538 = vmatprep.subr.mxu0 0.0
    %539 = vmatpush1.msra.mxu0 0.0
    %540 = vmatprep.subr.mxu0 0.0
    %541 = vmatpush1.msra.mxu0 0.0
    %542 = vmatprep.subr.mxu0 0.0
    %543 = vmatpush1.msra.mxu0 0.0
    %544 = vmatprep.subr.mxu0 0.0
    %545 = vmatpush1.msra.mxu0 0.0
    %546 = vmatprep.subr.mxu0 0.0
    %547 = vmatpush1.msra.mxu0 0.0
    %548 = vmatprep.subr.mxu0 0.0
    %549 = vmatpush1.msra.mxu0 0.0
    %550 = vmatprep.subr.mxu0 0.0
    %551 = vmatpush1.msra.mxu0 0.0
    %552 = vmatprep.subr.mxu0 0.0
    %553 = vmatpush1.msra.mxu0 0.0
    %554 = vmatprep.subr.mxu0 0.0
    %555 = vmatpush1.msra.mxu0 0.0
    %556 = vmatprep.subr.mxu0 0.0
    %557 = vmatpush1.msra.mxu0 0.0
    %558 = vmatprep.mubr.f32.mxu0 0.0
    %559 = vmatmul.mubr.f32.gmra.mrb[0].mxu0 %v491
    %v560 = vpop.f32.mrb[0].mxu0
    %v561 = vadd.f32 0.0, %v560
    %v562 = vpop.f32.mrb[0].mxu0
    %563 = vmatprep.mubr.f32.mxu0 0.0
    %564 = vmatmul.mubr.f32.gmra.mrb[0].mxu0 %v492
    %v565 = vpop.f32.mrb[0].mxu0
    %v566 = vadd.f32 0.0, %v565
    %v567 = vpop.f32.mrb[0].mxu0
    %568 = vmatprep.mubr.f32.mxu0 0.0
    %569 = vmatmul.mubr.f32.gmra.mrb[0].mxu0 %v493
    %v570 = vpop.f32.mrb[0].mxu0
    %v571 = vadd.f32 0.0, %v570
    %v572 = vpop.f32.mrb[0].mxu0
    %573 = vdwg.mxu0
    %v574 = vmax.f32 %v478, %v561
    %v575 = vmax.f32 %v483, %v566
    %v576 = vmax.f32 %v488, %v571
    %v577 = vsub.f32 %v478, %v574
    %v578 = vsub.f32 %v483, %v575
    %v579 = vsub.f32 %v488, %v576
    %v580 = vmul.f32 %v577, 1.442695
    %v581 = vpow.pop %v580
    %v582 = vmul.f32 %v578, 1.442695
    %v583 = vpow.pop %v582
    %v584 = vmul.f32 %v579, 1.442695
    %v585 = vpow.pop %v584
    %v586 = vsub.f32 %v561, %v574
    %v587 = vsub.f32 %v566, %v575
    %v588 = vsub.f32 %v571, %v576
    %v589 = vmul.f32 %v586, 1.442695
    %v590 = vpow.pop %v589
    %v591 = vmul.f32 %v587, 1.442695
    %v592 = vpow.pop %v591
    %v593 = vmul.f32 %v588, 1.442695
    %v594 = vpow.pop %v593
    %v595 = vadd.f32 %v581, %v590
    %v596 = vadd.f32 %v583, %v592
    %v597 = vadd.f32 %v585, %v594
    %v598 = vrcp.pop %v595
    %v599 = vrcp.pop %v596
    %v600 = vrcp.pop %v597
    %v601 = vmul.f32 %v581, %v598
    %v602 = vmul.f32 %v583, %v599
    %v603 = vmul.f32 %v585, %v600
    %vm604 = vcmask 64512
    %v606 = vsel %vm604, %v601, 0
    %v609 = vsel %vm604, %v602, 0
    %v612 = vsel %vm604, %v603, 0
    %614 = vmatprep.subr.mxu0 0.0
    %615 = vmatpush1.msra.mxu0 %v369
    %616 = vmatprep.subr.mxu0 0.0
    %617 = vmatpush1.msra.mxu0 0.0
    %618 = vmatprep.subr.mxu0 0.0
    %619 = vmatpush1.msra.mxu0 0.0
    %620 = vmatprep.subr.mxu0 0.0
    %621 = vmatpush1.msra.mxu0 0.0
    %622 = vmatprep.subr.mxu0 0.0
    %623 = vmatpush1.msra.mxu0 0.0
    %624 = vmatprep.subr.mxu0 0.0
    %625 = vmatpush1.msra.mxu0 0.0
    %626 = vmatprep.subr.mxu0 0.0
    %627 = vmatpush1.msra.mxu0 0.0
    %628 = vmatprep.subr.mxu0 0.0
    %629 = vmatpush1.msra.mxu0 0.0
    %630 = vmatprep.subr.mxu0 0.0
    %631 = vmatpush1.msra.mxu0 0.0
    %632 = vmatprep.subr.mxu0 0.0
    %633 = vmatpush1.msra.mxu0 0.0
    %634 = vmatprep.subr.mxu0 0.0
    %635 = vmatpush1.msra.mxu0 0.0
    %636 = vmatprep.subr.mxu0 0.0
    %637 = vmatpush1.msra.mxu0 0.0
    %638 = vmatprep.subr.mxu0 0.0
    %639 = vmatpush1.msra.mxu0 0.0
    %640 = vmatprep.subr.mxu0 0.0
    %641 = vmatpush1.msra.mxu0 0.0
    %642 = vmatprep.subr.mxu0 0.0
    %643 = vmatpush1.msra.mxu0 0.0
    %644 = vmatprep.subr.mxu0 0.0
    %645 = vmatpush1.msra.mxu0 0.0
    %646 = vmatprep.subr.mxu0 0.0
    %647 = vmatpush1.msra.mxu0 0.0
    %648 = vmatprep.subr.mxu0 0.0
    %649 = vmatpush1.msra.mxu0 0.0
    %650 = vmatprep.subr.mxu0 0.0
    %651 = vmatpush1.msra.mxu0 0.0
    %652 = vmatprep.subr.mxu0 0.0
    %653 = vmatpush1.msra.mxu0 0.0
    %654 = vmatprep.subr.mxu0 0.0
    %655 = vmatpush1.msra.mxu0 0.0
    %656 = vmatprep.subr.mxu0 0.0
    %657 = vmatpush1.msra.mxu0 0.0
    %658 = vmatprep.subr.mxu0 0.0
    %659 = vmatpush1.msra.mxu0 0.0
    %660 = vmatprep.subr.mxu0 0.0
    %661 = vmatpush1.msra.mxu0 0.0
    %662 = vmatprep.subr.mxu0 0.0
    %663 = vmatpush1.msra.mxu0 0.0
    %664 = vmatprep.subr.mxu0 0.0
    %665 = vmatpush1.msra.mxu0 0.0
    %666 = vmatprep.subr.mxu0 0.0
    %667 = vmatpush1.msra.mxu0 0.0
    %668 = vmatprep.subr.mxu0 0.0
    %669 = vmatpush1.msra.mxu0 0.0
    %670 = vmatprep.subr.mxu0 0.0
    %671 = vmatpush1.msra.mxu0 0.0
    %672 = vmatprep.subr.mxu0 0.0
    %673 = vmatpush1.msra.mxu0 0.0
    %674 = vmatprep.subr.mxu0 0.0
    %675 = vmatpush1.msra.mxu0 0.0
    %676 = vmatprep.subr.mxu0 0.0
    %677 = vmatpush1.msra.mxu0 0.0
    %678 = vmatprep.mubr.f32.mxu0 0.0
    %679 = vmatmul.mubr.f32.gmra.mrb[0].mxu0 %v606
    %v680 = vpop.f32.mrb[0].mxu0
    %v681 = vadd.f32 0.0, %v680
    %v682 = vpop.f32.mrb[0].mxu0
    %683 = vmatprep.mubr.f32.mxu0 0.0
    %684 = vmatmul.mubr.f32.gmra.mrb[0].mxu0 %v609
    %v685 = vpop.f32.mrb[0].mxu0
    %v686 = vadd.f32 0.0, %v685
    %v687 = vpop.f32.mrb[0].mxu0
    %688 = vmatprep.mubr.f32.mxu0 0.0
    %689 = vmatmul.mubr.f32.gmra.mrb[0].mxu0 %v612
    %v690 = vpop.f32.mrb[0].mxu0
    %v691 = vadd.f32 0.0, %v690
    %v692 = vpop.f32.mrb[0].mxu0
    %693 = vdwg.mxu0
    %v694 = vmul.f32 %v681, %v382
    %v695 = vmul.f32 %v686, %v383
    %v696 = vmul.f32 %v691, %v384
    %v697 = vadd.f32 %v694, 0.0
    %v698 = vadd.f32 %v695, 0.0
    %v699 = vadd.f32 %v696, 0.0
    %v700 = vmul.f32 %v590, %v598
    %v701 = vmul.f32 %v592, %v599
    %v702 = vmul.f32 %v594, %v600
    %v704 = vsel %vm604, %v700, 0
    %v707 = vsel %vm604, %v701, 0
    %v710 = vsel %vm604, %v702, 0
    %712 = vmatprep.subr.mxu0 0.0
    %713 = vmatpush1.msra.mxu0 %v369
    %714 = vmatprep.subr.mxu0 0.0
    %715 = vmatpush1.msra.mxu0 0.0
    %716 = vmatprep.subr.mxu0 0.0
    %717 = vmatpush1.msra.mxu0 0.0
    %718 = vmatprep.subr.mxu0 0.0
    %719 = vmatpush1.msra.mxu0 0.0
    %720 = vmatprep.subr.mxu0 0.0
    %721 = vmatpush1.msra.mxu0 0.0
    %722 = vmatprep.subr.mxu0 0.0
    %723 = vmatpush1.msra.mxu0 0.0
    %724 = vmatprep.subr.mxu0 0.0
    %725 = vmatpush1.msra.mxu0 0.0
    %726 = vmatprep.subr.mxu0 0.0
    %727 = vmatpush1.msra.mxu0 0.0
    %728 = vmatprep.subr.mxu0 0.0
    %729 = vmatpush1.msra.mxu0 0.0
    %730 = vmatprep.subr.mxu0 0.0
    %731 = vmatpush1.msra.mxu0 0.0
    %732 = vmatprep.subr.mxu0 0.0
    %733 = vmatpush1.msra.mxu0 0.0
    %734 = vmatprep.subr.mxu0 0.0
    %735 = vmatpush1.msra.mxu0 0.0
    %736 = vmatprep.subr.mxu0 0.0
    %737 = vmatpush1.msra.mxu0 0.0
    %738 = vmatprep.subr.mxu0 0.0
    %739 = vmatpush1.msra.mxu0 0.0
    %740 = vmatprep.subr.mxu0 0.0
    %741 = vmatpush1.msra.mxu0 0.0
    %742 = vmatprep.subr.mxu0 0.0
    %743 = vmatpush1.msra.mxu0 0.0
    %744 = vmatprep.subr.mxu0 0.0
    %745 = vmatpush1.msra.mxu0 0.0
    %746 = vmatprep.subr.mxu0 0.0
    %747 = vmatpush1.msra.mxu0 0.0
    %748 = vmatprep.subr.mxu0 0.0
    %749 = vmatpush1.msra.mxu0 0.0
    %750 = vmatprep.subr.mxu0 0.0
    %751 = vmatpush1.msra.mxu0 0.0
    %752 = vmatprep.subr.mxu0 0.0
    %753 = vmatpush1.msra.mxu0 0.0
    %754 = vmatprep.subr.mxu0 0.0
    %755 = vmatpush1.msra.mxu0 0.0
    %756 = vmatprep.subr.mxu0 0.0
    %757 = vmatpush1.msra.mxu0 0.0
    %758 = vmatprep.subr.mxu0 0.0
    %759 = vmatpush1.msra.mxu0 0.0
    %760 = vmatprep.subr.mxu0 0.0
    %761 = vmatpush1.msra.mxu0 0.0
    %762 = vmatprep.subr.mxu0 0.0
    %763 = vmatpush1.msra.mxu0 0.0
    %764 = vmatprep.subr.mxu0 0.0
    %765 = vmatpush1.msra.mxu0 0.0
    %766 = vmatprep.subr.mxu0 0.0
    %767 = vmatpush1.msra.mxu0 0.0
    %768 = vmatprep.subr.mxu0 0.0
    %769 = vmatpush1.msra.mxu0 0.0
    %770 = vmatprep.subr.mxu0 0.0
    %771 = vmatpush1.msra.mxu0 0.0
    %772 = vmatprep.subr.mxu0 0.0
    %773 = vmatpush1.msra.mxu0 0.0
    %774 = vmatprep.subr.mxu0 0.0
    %775 = vmatpush1.msra.mxu0 0.0
    %776 = vmatprep.mubr.f32.mxu0 0.0
    %777 = vmatmul.mubr.f32.gmra.mrb[0].mxu0 %v704
    %v778 = vpop.f32.mrb[0].mxu0
    %v779 = vadd.f32 0.0, %v778
    %v780 = vpop.f32.mrb[0].mxu0
    %781 = vmatprep.mubr.f32.mxu0 0.0
    %782 = vmatmul.mubr.f32.gmra.mrb[0].mxu0 %v707
    %v783 = vpop.f32.mrb[0].mxu0
    %v784 = vadd.f32 0.0, %v783
    %v785 = vpop.f32.mrb[0].mxu0
    %786 = vmatprep.mubr.f32.mxu0 0.0
    %787 = vmatmul.mubr.f32.gmra.mrb[0].mxu0 %v710
    %v788 = vpop.f32.mrb[0].mxu0
    %v789 = vadd.f32 0.0, %v788
    %v790 = vpop.f32.mrb[0].mxu0
    %791 = vdwg.mxu0
    %v792 = vmul.f32 %v779, %v394
    %v793 = vmul.f32 %v784, %v395
    %v794 = vmul.f32 %v789, %v396
    %v795 = vadd.f32 %v697, %v792
    %v796 = vadd.f32 %v698, %v793
    %v797 = vadd.f32 %v699, %v794
    %v798 = vld [vmem:[%s5] sm:$0xff]
    %v799 = vld [vmem:[%s5 + $0x8] sm:$0xff]
    %v800 = vld [vmem:[%s5 + $0x10] sm:$0xff]
    %v801 = vld [vmem:[%s5 + $0x18] sm:$0xff]
    %v802 = vld [vmem:[%s5 + $0x20] sm:$0xff]
    %v803 = vld [vmem:[%s5 + $0x28] sm:$0xff]
    %v804 = vld [vmem:[%s5 + $0x30] sm:$0xff]
    %v805 = vld [vmem:[%s5 + $0x38] sm:$0xff]
    %v806 = vld [vmem:[%s5 + $0x40] sm:$0xff]
    %v807 = vld [vmem:[%s5 + $0x48] sm:$0xff]
    %v808 = vld [vmem:[%s5 + $0x50] sm:$0xff]
    %v809 = vld [vmem:[%s5 + $0x58] sm:$0xff]
    %v810 = vld [vmem:[%s5 + $0x60] sm:$0xff]
    %v811 = vld [vmem:[%s5 + $0x68] sm:$0xff]
    %v812 = vld [vmem:[%s5 + $0x70] sm:$0xff]
    %v813 = vld [vmem:[%s5 + $0x78] sm:$0xff]
    %v814 = vlaneseq
    %v815 = vshrl.u32 %v814, 7
    %v816 = vsub.s32 0, %v815
    %v817 = vrot.slane %v370, %v816
    %818 = vmatprep.subr.mxu0 0.0
    %819 = vmatpush1.msra.mxu0 %v798
    %820 = vmatprep.subr.mxu0 0.0
    %821 = vmatpush1.msra.mxu0 %v799
    %822 = vmatprep.subr.mxu0 0.0
    %823 = vmatpush1.msra.mxu0 %v800
    %824 = vmatprep.subr.mxu0 0.0
    %825 = vmatpush1.msra.mxu0 %v801
    %826 = vmatprep.subr.mxu0 0.0
    %827 = vmatpush1.msra.mxu0 %v802
    %828 = vmatprep.subr.mxu0 0.0
    %829 = vmatpush1.msra.mxu0 %v803
    %830 = vmatprep.subr.mxu0 0.0
    %831 = vmatpush1.msra.mxu0 %v804
    %832 = vmatprep.subr.mxu0 0.0
    %833 = vmatpush1.msra.mxu0 %v805
    %834 = vmatprep.subr.mxu0 0.0
    %835 = vmatpush1.msra.mxu0 %v806
    %836 = vmatprep.subr.mxu0 0.0
    %837 = vmatpush1.msra.mxu0 %v807
    %838 = vmatprep.subr.mxu0 0.0
    %839 = vmatpush1.msra.mxu0 %v808
    %840 = vmatprep.subr.mxu0 0.0
    %841 = vmatpush1.msra.mxu0 %v809
    %842 = vmatprep.subr.mxu0 0.0
    %843 = vmatpush1.msra.mxu0 %v810
    %844 = vmatprep.subr.mxu0 0.0
    %845 = vmatpush1.msra.mxu0 %v811
    %846 = vmatprep.subr.mxu0 0.0
    %847 = vmatpush1.msra.mxu0 %v812
    %848 = vmatprep.subr.mxu0 0.0
    %849 = vmatpush1.msra.mxu0 %v813
    %850 = vmatprep.subr.mxu0 0.0
    %851 = vmatpush1.msra.mxu0 0.0
    %852 = vmatprep.subr.mxu0 0.0
    %853 = vmatpush1.msra.mxu0 0.0
    %854 = vmatprep.subr.mxu0 0.0
    %855 = vmatpush1.msra.mxu0 0.0
    %856 = vmatprep.subr.mxu0 0.0
    %857 = vmatpush1.msra.mxu0 0.0
    %858 = vmatprep.subr.mxu0 0.0
    %859 = vmatpush1.msra.mxu0 0.0
    %860 = vmatprep.subr.mxu0 0.0
    %861 = vmatpush1.msra.mxu0 0.0
    %862 = vmatprep.subr.mxu0 0.0
    %863 = vmatpush1.msra.mxu0 0.0
    %864 = vmatprep.subr.mxu0 0.0
    %865 = vmatpush1.msra.mxu0 0.0
    %866 = vmatprep.subr.mxu0 0.0
    %867 = vmatpush1.msra.mxu0 0.0
    %868 = vmatprep.subr.mxu0 0.0
    %869 = vmatpush1.msra.mxu0 0.0
    %870 = vmatprep.subr.mxu0 0.0
    %871 = vmatpush1.msra.mxu0 0.0
    %872 = vmatprep.subr.mxu0 0.0
    %873 = vmatpush1.msra.mxu0 0.0
    %874 = vmatprep.subr.mxu0 0.0
    %875 = vmatpush1.msra.mxu0 0.0
    %876 = vmatprep.subr.mxu0 0.0
    %877 = vmatpush1.msra.mxu0 0.0
    %878 = vmatprep.subr.mxu0 0.0
    %879 = vmatpush1.msra.mxu0 0.0
    %880 = vmatprep.subr.mxu0 0.0
    %881 = vmatpush1.msra.mxu0 0.0
    %882 = vmatprep.mubr.f32.mxu0 0.0
    %883 = vmatmul.mubr.f32.gmra.mrb[0].mxu0 %v795
    %v884 = vpop.f32.mrb[0].mxu0
    %v885 = vadd.f32 %v817, %v884
    %v886 = vpop.f32.mrb[0].mxu0
    %887 = vmatprep.mubr.f32.mxu0 0.0
    %888 = vmatmul.mubr.f32.gmra.mrb[0].mxu0 %v796
    %v889 = vpop.f32.mrb[0].mxu0
    %v890 = vadd.f32 %v817, %v889
    %v891 = vpop.f32.mrb[0].mxu0
    %892 = vmatprep.mubr.f32.mxu0 0.0
    %893 = vmatmul.mubr.f32.gmra.mrb[0].mxu0 %v797
    %v894 = vpop.f32.mrb[0].mxu0
    %v895 = vadd.f32 %v817, %v894
    %v896 = vpop.f32.mrb[0].mxu0
    %897 = vdwg.mxu0
    %898 = vadd.xlane.f32.xlu0 %v885
    %v899 = vpop.xlane.xlu0 %898
    %900 = vadd.xlane.f32.xlu0 %v890
    %v901 = vpop.xlane.xlu0 %900
    %902 = vadd.xlane.f32.xlu0 %v895
    %v903 = vpop.xlane.xlu0 %902
    %v904 = vrcp.pop 128.0
    %v905 = vmul.f32 %v899, %v904
    %v906 = vmul.f32 %v901, %v904
    %v907 = vmul.f32 %v903, %v904
    %v908 = vsub.f32 %v885, %v905
    %v909 = vsub.f32 %v890, %v906
    %v910 = vsub.f32 %v895, %v907
    %v911 = vmul.f32 %v908, %v908
    %v912 = vmul.f32 %v909, %v909
    %v913 = vmul.f32 %v910, %v910
    %914 = vadd.xlane.f32.xlu0 %v911
    %v915 = vpop.xlane.xlu0 %914
    %916 = vadd.xlane.f32.xlu0 %v912
    %v917 = vpop.xlane.xlu0 %916
    %918 = vadd.xlane.f32.xlu0 %v913
    %v919 = vpop.xlane.xlu0 %918
    %v920 = vmul.f32 %v915, %v904
    %v921 = vmul.f32 %v917, %v904
    %v922 = vmul.f32 %v919, %v904
    %v923 = vadd.f32 %v920, 1e-05
    %v924 = vadd.f32 %v921, 1e-05
    %v925 = vadd.f32 %v922, 1e-05
    %v926 = vrsqrt.pop %v923
    %v927 = vrsqrt.pop %v924
    %v928 = vrsqrt.pop %v925
    %v929 = vmul.f32 %v908, %v926
    %v930 = vmul.f32 %v909, %v927
    %v931 = vmul.f32 %v910, %v928
    %v932 = vlaneseq
    %v933 = vshrl.u32 %v932, 7
    %v934 = vsub.s32 0, %v933
    %v935 = vrot.slane %v371, %v934
    %v936 = vmul.f32 %v929, %v935
    %v937 = vmul.f32 %v930, %v935
    %v938 = vmul.f32 %v931, %v935
    %v939 = vlaneseq
    %v940 = vshrl.u32 %v939, 7
    %v941 = vsub.s32 0, %v940
    %v942 = vrot.slane %v372, %v941
    %v943 = vadd.f32 %v936, %v942
    %v944 = vadd.f32 %v937, %v942
    %v945 = vadd.f32 %v938, %v942
    %v946 = vmul.f32 %v943, 0.5
    %v947 = vmul.f32 %v944, 0.5
    %v948 = vmul.f32 %v945, 0.5
    %v949 = vrcp.pop 1.4142135
    %v950 = vmul.f32 %v943, %v949
    %v951 = vmul.f32 %v944, %v949
    %v952 = vmul.f32 %v945, %v949
    %vm953 = vcmp.ge.f32.partialorder %v950, 0.0
    %vm954 = vcmp.ge.f32.partialorder %v951, 0.0
    %vm955 = vcmp.ge.f32.partialorder %v952, 0.0
    %v956 = vsel %vm953, 1.0, -1.0
    %v957 = vsel %vm954, 1.0, -1.0
    %v958 = vsel %vm955, 1.0, -1.0
    %v959 = vand.u32 2147483647, %v950
    %v960 = vand.u32 2147483647, %v951
    %v961 = vand.u32 2147483647, %v952
    %v962 = vmul.f32 %v959, 0.3275911
    %v963 = vmul.f32 %v960, 0.3275911
    %v964 = vmul.f32 %v961, 0.3275911
    %v965 = vadd.f32 %v962, 1.0
    %v966 = vadd.f32 %v963, 1.0
    %v967 = vadd.f32 %v964, 1.0
    %v968 = vrcp.pop %v965
    %v969 = vrcp.pop %v966
    %v970 = vrcp.pop %v967
    %v971 = vmul.f32 %v968, 1.0614054
    %v972 = vmul.f32 %v969, 1.0614054
    %v973 = vmul.f32 %v970, 1.0614054
    %v974 = vadd.f32 %v971, -1.4531521
    %v975 = vadd.f32 %v972, -1.4531521
    %v976 = vadd.f32 %v973, -1.4531521
    %v977 = vmul.f32 %v974, %v968
    %v978 = vmul.f32 %v975, %v969
    %v979 = vmul.f32 %v976, %v970
    %v980 = vadd.f32 %v977, 1.4214138
    %v981 = vadd.f32 %v978, 1.4214138
    %v982 = vadd.f32 %v979, 1.4214138
    %v983 = vmul.f32 %v980, %v968
    %v984 = vmul.f32 %v981, %v969
    %v985 = vmul.f32 %v982, %v970
    %v986 = vadd.f32 %v983, -0.28449672
    %v987 = vadd.f32 %v984, -0.28449672
    %v988 = vadd.f32 %v985, -0.28449672
    %v989 = vmul.f32 %v986, %v968
    %v990 = vmul.f32 %v987, %v969
    %v991 = vmul.f32 %v988, %v970
    %v992 = vadd.f32 %v989, 0.2548296
    %v993 = vadd.f32 %v990, 0.2548296
    %v994 = vadd.f32 %v991, 0.2548296
    %v995 = vmul.f32 %v992, %v968
    %v996 = vmul.f32 %v993, %v969
    %v997 = vmul.f32 %v994, %v970
    %v998 = vsub.f32 0.0, %v959
    %v999 = vsub.f32 0.0, %v960
    %v1000 = vsub.f32 0.0, %v961
    %v1001 = vmul.f32 %v998, %v959
    %v1002 = vmul.f32 %v999, %v960
    %v1003 = vmul.f32 %v1000, %v961
    %v1004 = vmul.f32 %v1001, 1.442695
    %v1005 = vpow.pop %v1004
    %v1006 = vmul.f32 %v1002, 1.442695
    %v1007 = vpow.pop %v1006
    %v1008 = vmul.f32 %v1003, 1.442695
    %v1009 = vpow.pop %v1008
    %v1010 = vmul.f32 %v995, %v1005
    %v1011 = vmul.f32 %v996, %v1007
    %v1012 = vmul.f32 %v997, %v1009
    %v1013 = vsub.f32 1.0, %v1010
    %v1014 = vsub.f32 1.0, %v1011
    %v1015 = vsub.f32 1.0, %v1012
    %v1016 = vmul.f32 %v956, %v1013
    %v1017 = vmul.f32 %v957, %v1014
    %v1018 = vmul.f32 %v958, %v1015
    %v1019 = vadd.f32 %v1016, 1.0
    %v1020 = vadd.f32 %v1017, 1.0
    %v1021 = vadd.f32 %v1018, 1.0
    %v1022 = vmul.f32 %v946, %v1019
    %v1023 = vmul.f32 %v947, %v1020
    %v1024 = vmul.f32 %v948, %v1021
    %v1025 = vsel %vm405, 1, 0
    %v1026 = vsel %vm406, 1, 0
    %v1027 = vsel %vm407, 1, 0
    %vm1028 = vcmp.eq.s32.totalorder %v1025, 1
    %vm1029 = vcmp.eq.s32.totalorder %v1026, 1
    %vm1030 = vcmp.eq.s32.totalorder %v1027, 1
    %v1031 = vsel %vm1028, %v1022, 0.0
    %v1032 = vsel %vm1029, %v1023, 0.0
    %v1033 = vsel %vm1030, %v1024, 0.0
    %v1034 = vadd.f32 %v1031, %v1032
    %v1035 = vadd.f32 %v1034, %v1033
    %v1036 = vrot.slane %v1035, 4
    %v1037 = vadd.f32 %v1035, %v1036
    %v1038 = vrot.slane %v1037, 2
    %v1039 = vadd.f32 %v1037, %v1038
    %v1040 = vrot.slane %v1039, 1
    %v1041 = vadd.f32 %v1039, %v1040
    %v1042 = vmul.f32 %v388, %v379
    %v1043 = vmul.f32 %v389, %v380
    %v1044 = vmul.f32 %v390, %v381
    %1045 = vmatprep.subr.mxu0 0.0
    %1046 = vmatpush1.msra.mxu0 %v353
    %1047 = vmatprep.subr.mxu0 0.0
    %1048 = vmatpush1.msra.mxu0 %v354
    %1049 = vmatprep.subr.mxu0 0.0
    %1050 = vmatpush1.msra.mxu0 %v355
    %1051 = vmatprep.subr.mxu0 0.0
    %1052 = vmatpush1.msra.mxu0 %v356
    %1053 = vmatprep.subr.mxu0 0.0
    %1054 = vmatpush1.msra.mxu0 %v357
    %1055 = vmatprep.subr.mxu0 0.0
    %1056 = vmatpush1.msra.mxu0 %v358
    %1057 = vmatprep.subr.mxu0 0.0
    %1058 = vmatpush1.msra.mxu0 %v359
    %1059 = vmatprep.subr.mxu0 0.0
    %1060 = vmatpush1.msra.mxu0 %v360
    %1061 = vmatprep.subr.mxu0 0.0
    %1062 = vmatpush1.msra.mxu0 %v361
    %1063 = vmatprep.subr.mxu0 0.0
    %1064 = vmatpush1.msra.mxu0 %v362
    %1065 = vmatprep.subr.mxu0 0.0
    %1066 = vmatpush1.msra.mxu0 %v363
    %1067 = vmatprep.subr.mxu0 0.0
    %1068 = vmatpush1.msra.mxu0 %v364
    %1069 = vmatprep.subr.mxu0 0.0
    %1070 = vmatpush1.msra.mxu0 %v365
    %1071 = vmatprep.subr.mxu0 0.0
    %1072 = vmatpush1.msra.mxu0 %v366
    %1073 = vmatprep.subr.mxu0 0.0
    %1074 = vmatpush1.msra.mxu0 %v367
    %1075 = vmatprep.subr.mxu0 0.0
    %1076 = vmatpush1.msra.mxu0 %v368
    %1077 = vmatprep.subr.mxu0 0.0
    %1078 = vmatpush1.msra.mxu0 0.0
    %1079 = vmatprep.subr.mxu0 0.0
    %1080 = vmatpush1.msra.mxu0 0.0
    %1081 = vmatprep.subr.mxu0 0.0
    %1082 = vmatpush1.msra.mxu0 0.0
    %1083 = vmatprep.subr.mxu0 0.0
    %1084 = vmatpush1.msra.mxu0 0.0
    %1085 = vmatprep.subr.mxu0 0.0
    %1086 = vmatpush1.msra.mxu0 0.0
    %1087 = vmatprep.subr.mxu0 0.0
    %1088 = vmatpush1.msra.mxu0 0.0
    %1089 = vmatprep.subr.mxu0 0.0
    %1090 = vmatpush1.msra.mxu0 0.0
    %1091 = vmatprep.subr.mxu0 0.0
    %1092 = vmatpush1.msra.mxu0 0.0
    %1093 = vmatprep.subr.mxu0 0.0
    %1094 = vmatpush1.msra.mxu0 0.0
    %1095 = vmatprep.subr.mxu0 0.0
    %1096 = vmatpush1.msra.mxu0 0.0
    %1097 = vmatprep.subr.mxu0 0.0
    %1098 = vmatpush1.msra.mxu0 0.0
    %1099 = vmatprep.subr.mxu0 0.0
    %1100 = vmatpush1.msra.mxu0 0.0
    %1101 = vmatprep.subr.mxu0 0.0
    %1102 = vmatpush1.msra.mxu0 0.0
    %1103 = vmatprep.subr.mxu0 0.0
    %1104 = vmatpush1.msra.mxu0 0.0
    %1105 = vmatprep.subr.mxu0 0.0
    %1106 = vmatpush1.msra.mxu0 0.0
    %1107 = vmatprep.subr.mxu0 0.0
    %1108 = vmatpush1.msra.mxu0 0.0
    %1109 = vmatprep.mubr.f32.mxu0 0.0
    %1110 = vmatmul.mubr.f32.gmra.mrb[0].mxu0 %v1042
    %v1111 = vpop.f32.mrb[0].mxu0
    %v1112 = vadd.f32 0.0, %v1111
    %v1113 = vpop.f32.mrb[0].mxu0
    %1114 = vmatprep.mubr.f32.mxu0 0.0
    %1115 = vmatmul.mubr.f32.gmra.mrb[0].mxu0 %v1043
    %v1116 = vpop.f32.mrb[0].mxu0
    %v1117 = vadd.f32 0.0, %v1116
    %v1118 = vpop.f32.mrb[0].mxu0
    %1119 = vmatprep.mubr.f32.mxu0 0.0
    %1120 = vmatmul.mubr.f32.gmra.mrb[0].mxu0 %v1044
    %v1121 = vpop.f32.mrb[0].mxu0
    %v1122 = vadd.f32 0.0, %v1121
    %v1123 = vpop.f32.mrb[0].mxu0
    %1124 = vdwg.mxu0
    %v1125 = vmul.f32 %v388, %v391
    %v1126 = vmul.f32 %v389, %v392
    %v1127 = vmul.f32 %v390, %v393
    %1128 = vmatprep.subr.mxu0 0.0
    %1129 = vmatpush1.msra.mxu0 %v353
    %1130 = vmatprep.subr.mxu0 0.0
    %1131 = vmatpush1.msra.mxu0 %v354
    %1132 = vmatprep.subr.mxu0 0.0
    %1133 = vmatpush1.msra.mxu0 %v355
    %1134 = vmatprep.subr.mxu0 0.0
    %1135 = vmatpush1.msra.mxu0 %v356
    %1136 = vmatprep.subr.mxu0 0.0
    %1137 = vmatpush1.msra.mxu0 %v357
    %1138 = vmatprep.subr.mxu0 0.0
    %1139 = vmatpush1.msra.mxu0 %v358
    %1140 = vmatprep.subr.mxu0 0.0
    %1141 = vmatpush1.msra.mxu0 %v359
    %1142 = vmatprep.subr.mxu0 0.0
    %1143 = vmatpush1.msra.mxu0 %v360
    %1144 = vmatprep.subr.mxu0 0.0
    %1145 = vmatpush1.msra.mxu0 %v361
    %1146 = vmatprep.subr.mxu0 0.0
    %1147 = vmatpush1.msra.mxu0 %v362
    %1148 = vmatprep.subr.mxu0 0.0
    %1149 = vmatpush1.msra.mxu0 %v363
    %1150 = vmatprep.subr.mxu0 0.0
    %1151 = vmatpush1.msra.mxu0 %v364
    %1152 = vmatprep.subr.mxu0 0.0
    %1153 = vmatpush1.msra.mxu0 %v365
    %1154 = vmatprep.subr.mxu0 0.0
    %1155 = vmatpush1.msra.mxu0 %v366
    %1156 = vmatprep.subr.mxu0 0.0
    %1157 = vmatpush1.msra.mxu0 %v367
    %1158 = vmatprep.subr.mxu0 0.0
    %1159 = vmatpush1.msra.mxu0 %v368
    %1160 = vmatprep.subr.mxu0 0.0
    %1161 = vmatpush1.msra.mxu0 0.0
    %1162 = vmatprep.subr.mxu0 0.0
    %1163 = vmatpush1.msra.mxu0 0.0
    %1164 = vmatprep.subr.mxu0 0.0
    %1165 = vmatpush1.msra.mxu0 0.0
    %1166 = vmatprep.subr.mxu0 0.0
    %1167 = vmatpush1.msra.mxu0 0.0
    %1168 = vmatprep.subr.mxu0 0.0
    %1169 = vmatpush1.msra.mxu0 0.0
    %1170 = vmatprep.subr.mxu0 0.0
    %1171 = vmatpush1.msra.mxu0 0.0
    %1172 = vmatprep.subr.mxu0 0.0
    %1173 = vmatpush1.msra.mxu0 0.0
    %1174 = vmatprep.subr.mxu0 0.0
    %1175 = vmatpush1.msra.mxu0 0.0
    %1176 = vmatprep.subr.mxu0 0.0
    %1177 = vmatpush1.msra.mxu0 0.0
    %1178 = vmatprep.subr.mxu0 0.0
    %1179 = vmatpush1.msra.mxu0 0.0
    %1180 = vmatprep.subr.mxu0 0.0
    %1181 = vmatpush1.msra.mxu0 0.0
    %1182 = vmatprep.subr.mxu0 0.0
    %1183 = vmatpush1.msra.mxu0 0.0
    %1184 = vmatprep.subr.mxu0 0.0
    %1185 = vmatpush1.msra.mxu0 0.0
    %1186 = vmatprep.subr.mxu0 0.0
    %1187 = vmatpush1.msra.mxu0 0.0
    %1188 = vmatprep.subr.mxu0 0.0
    %1189 = vmatpush1.msra.mxu0 0.0
    %1190 = vmatprep.subr.mxu0 0.0
    %1191 = vmatpush1.msra.mxu0 0.0
    %1192 = vmatprep.mubr.f32.mxu0 0.0
    %1193 = vmatmul.mubr.f32.gmra.mrb[0].mxu0 %v1125
    %v1194 = vpop.f32.mrb[0].mxu0
    %v1195 = vadd.f32 0.0, %v1194
    %v1196 = vpop.f32.mrb[0].mxu0
    %1197 = vmatprep.mubr.f32.mxu0 0.0
    %1198 = vmatmul.mubr.f32.gmra.mrb[0].mxu0 %v1126
    %v1199 = vpop.f32.mrb[0].mxu0
    %v1200 = vadd.f32 0.0, %v1199
    %v1201 = vpop.f32.mrb[0].mxu0
    %1202 = vmatprep.mubr.f32.mxu0 0.0
    %1203 = vmatmul.mubr.f32.gmra.mrb[0].mxu0 %v1127
    %v1204 = vpop.f32.mrb[0].mxu0
    %v1205 = vadd.f32 0.0, %v1204
    %v1206 = vpop.f32.mrb[0].mxu0
    %1207 = vdwg.mxu0
    %v1208 = vmax.f32 %v1112, %v1195
    %v1209 = vmax.f32 %v1117, %v1200
    %v1210 = vmax.f32 %v1122, %v1205
    %v1211 = vsub.f32 %v1112, %v1208
    %v1212 = vsub.f32 %v1117, %v1209
    %v1213 = vsub.f32 %v1122, %v1210
    %v1214 = vmul.f32 %v1211, 1.442695
    %v1215 = vpow.pop %v1214
    %v1216 = vmul.f32 %v1212, 1.442695
    %v1217 = vpow.pop %v1216
    %v1218 = vmul.f32 %v1213, 1.442695
    %v1219 = vpow.pop %v1218
    %v1220 = vsub.f32 %v1195, %v1208
    %v1221 = vsub.f32 %v1200, %v1209
    %v1222 = vsub.f32 %v1205, %v1210
    %v1223 = vmul.f32 %v1220, 1.442695
    %v1224 = vpow.pop %v1223
    %v1225 = vmul.f32 %v1221, 1.442695
    %v1226 = vpow.pop %v1225
    %v1227 = vmul.f32 %v1222, 1.442695
    %v1228 = vpow.pop %v1227
    %v1229 = vadd.f32 %v1215, %v1224
    %v1230 = vadd.f32 %v1217, %v1226
    %v1231 = vadd.f32 %v1219, %v1228
    %v1232 = vrcp.pop %v1229
    %v1233 = vrcp.pop %v1230
    %v1234 = vrcp.pop %v1231
    %v1235 = vmul.f32 %v1215, %v1232
    %v1236 = vmul.f32 %v1217, %v1233
    %v1237 = vmul.f32 %v1219, %v1234
    %v1239 = vsel %vm604, %v1235, 0
    %v1242 = vsel %vm604, %v1236, 0
    %v1245 = vsel %vm604, %v1237, 0
    %1247 = vmatprep.subr.mxu0 0.0
    %1248 = vmatpush1.msra.mxu0 %v369
    %1249 = vmatprep.subr.mxu0 0.0
    %1250 = vmatpush1.msra.mxu0 0.0
    %1251 = vmatprep.subr.mxu0 0.0
    %1252 = vmatpush1.msra.mxu0 0.0
    %1253 = vmatprep.subr.mxu0 0.0
    %1254 = vmatpush1.msra.mxu0 0.0
    %1255 = vmatprep.subr.mxu0 0.0
    %1256 = vmatpush1.msra.mxu0 0.0
    %1257 = vmatprep.subr.mxu0 0.0
    %1258 = vmatpush1.msra.mxu0 0.0
    %1259 = vmatprep.subr.mxu0 0.0
    %1260 = vmatpush1.msra.mxu0 0.0
    %1261 = vmatprep.subr.mxu0 0.0
    %1262 = vmatpush1.msra.mxu0 0.0
    %1263 = vmatprep.subr.mxu0 0.0
    %1264 = vmatpush1.msra.mxu0 0.0
    %1265 = vmatprep.subr.mxu0 0.0
    %1266 = vmatpush1.msra.mxu0 0.0
    %1267 = vmatprep.subr.mxu0 0.0
    %1268 = vmatpush1.msra.mxu0 0.0
    %1269 = vmatprep.subr.mxu0 0.0
    %1270 = vmatpush1.msra.mxu0 0.0
    %1271 = vmatprep.subr.mxu0 0.0
    %1272 = vmatpush1.msra.mxu0 0.0
    %1273 = vmatprep.subr.mxu0 0.0
    %1274 = vmatpush1.msra.mxu0 0.0
    %1275 = vmatprep.subr.mxu0 0.0
    %1276 = vmatpush1.msra.mxu0 0.0
    %1277 = vmatprep.subr.mxu0 0.0
    %1278 = vmatpush1.msra.mxu0 0.0
    %1279 = vmatprep.subr.mxu0 0.0
    %1280 = vmatpush1.msra.mxu0 0.0
    %1281 = vmatprep.subr.mxu0 0.0
    %1282 = vmatpush1.msra.mxu0 0.0
    %1283 = vmatprep.subr.mxu0 0.0
    %1284 = vmatpush1.msra.mxu0 0.0
    %1285 = vmatprep.subr.mxu0 0.0
    %1286 = vmatpush1.msra.mxu0 0.0
    %1287 = vmatprep.subr.mxu0 0.0
    %1288 = vmatpush1.msra.mxu0 0.0
    %1289 = vmatprep.subr.mxu0 0.0
    %1290 = vmatpush1.msra.mxu0 0.0
    %1291 = vmatprep.subr.mxu0 0.0
    %1292 = vmatpush1.msra.mxu0 0.0
    %1293 = vmatprep.subr.mxu0 0.0
    %1294 = vmatpush1.msra.mxu0 0.0
    %1295 = vmatprep.subr.mxu0 0.0
    %1296 = vmatpush1.msra.mxu0 0.0
    %1297 = vmatprep.subr.mxu0 0.0
    %1298 = vmatpush1.msra.mxu0 0.0
    %1299 = vmatprep.subr.mxu0 0.0
    %1300 = vmatpush1.msra.mxu0 0.0
    %1301 = vmatprep.subr.mxu0 0.0
    %1302 = vmatpush1.msra.mxu0 0.0
    %1303 = vmatprep.subr.mxu0 0.0
    %1304 = vmatpush1.msra.mxu0 0.0
    %1305 = vmatprep.subr.mxu0 0.0
    %1306 = vmatpush1.msra.mxu0 0.0
    %1307 = vmatprep.subr.mxu0 0.0
    %1308 = vmatpush1.msra.mxu0 0.0
    %1309 = vmatprep.subr.mxu0 0.0
    %1310 = vmatpush1.msra.mxu0 0.0
    %1311 = vmatprep.mubr.f32.mxu0 0.0
    %1312 = vmatmul.mubr.f32.gmra.mrb[0].mxu0 %v1239
    %v1313 = vpop.f32.mrb[0].mxu0
    %v1314 = vadd.f32 0.0, %v1313
    %v1315 = vpop.f32.mrb[0].mxu0
    %1316 = vmatprep.mubr.f32.mxu0 0.0
    %1317 = vmatmul.mubr.f32.gmra.mrb[0].mxu0 %v1242
    %v1318 = vpop.f32.mrb[0].mxu0
    %v1319 = vadd.f32 0.0, %v1318
    %v1320 = vpop.f32.mrb[0].mxu0
    %1321 = vmatprep.mubr.f32.mxu0 0.0
    %1322 = vmatmul.mubr.f32.gmra.mrb[0].mxu0 %v1245
    %v1323 = vpop.f32.mrb[0].mxu0
    %v1324 = vadd.f32 0.0, %v1323
    %v1325 = vpop.f32.mrb[0].mxu0
    %1326 = vdwg.mxu0
    %v1327 = vmul.f32 %v1314, %v382
    %v1328 = vmul.f32 %v1319, %v383
    %v1329 = vmul.f32 %v1324, %v384
    %v1330 = vadd.f32 %v1327, 0.0
    %v1331 = vadd.f32 %v1328, 0.0
    %v1332 = vadd.f32 %v1329, 0.0
    %v1333 = vmul.f32 %v1224, %v1232
    %v1334 = vmul.f32 %v1226, %v1233
    %v1335 = vmul.f32 %v1228, %v1234
    %v1337 = vsel %vm604, %v1333, 0
    %v1340 = vsel %vm604, %v1334, 0
    %v1343 = vsel %vm604, %v1335, 0
    %1345 = vmatprep.subr.mxu0 0.0
    %1346 = vmatpush1.msra.mxu0 %v369
    %1347 = vmatprep.subr.mxu0 0.0
    %1348 = vmatpush1.msra.mxu0 0.0
    %1349 = vmatprep.subr.mxu0 0.0
    %1350 = vmatpush1.msra.mxu0 0.0
    %1351 = vmatprep.subr.mxu0 0.0
    %1352 = vmatpush1.msra.mxu0 0.0
    %1353 = vmatprep.subr.mxu0 0.0
    %1354 = vmatpush1.msra.mxu0 0.0
    %1355 = vmatprep.subr.mxu0 0.0
    %1356 = vmatpush1.msra.mxu0 0.0
    %1357 = vmatprep.subr.mxu0 0.0
    %1358 = vmatpush1.msra.mxu0 0.0
    %1359 = vmatprep.subr.mxu0 0.0
    %1360 = vmatpush1.msra.mxu0 0.0
    %1361 = vmatprep.subr.mxu0 0.0
    %1362 = vmatpush1.msra.mxu0 0.0
    %1363 = vmatprep.subr.mxu0 0.0
    %1364 = vmatpush1.msra.mxu0 0.0
    %1365 = vmatprep.subr.mxu0 0.0
    %1366 = vmatpush1.msra.mxu0 0.0
    %1367 = vmatprep.subr.mxu0 0.0
    %1368 = vmatpush1.msra.mxu0 0.0
    %1369 = vmatprep.subr.mxu0 0.0
    %1370 = vmatpush1.msra.mxu0 0.0
    %1371 = vmatprep.subr.mxu0 0.0
    %1372 = vmatpush1.msra.mxu0 0.0
    %1373 = vmatprep.subr.mxu0 0.0
    %1374 = vmatpush1.msra.mxu0 0.0
    %1375 = vmatprep.subr.mxu0 0.0
    %1376 = vmatpush1.msra.mxu0 0.0
    %1377 = vmatprep.subr.mxu0 0.0
    %1378 = vmatpush1.msra.mxu0 0.0
    %1379 = vmatprep.subr.mxu0 0.0
    %1380 = vmatpush1.msra.mxu0 0.0
    %1381 = vmatprep.subr.mxu0 0.0
    %1382 = vmatpush1.msra.mxu0 0.0
    %1383 = vmatprep.subr.mxu0 0.0
    %1384 = vmatpush1.msra.mxu0 0.0
    %1385 = vmatprep.subr.mxu0 0.0
    %1386 = vmatpush1.msra.mxu0 0.0
    %1387 = vmatprep.subr.mxu0 0.0
    %1388 = vmatpush1.msra.mxu0 0.0
    %1389 = vmatprep.subr.mxu0 0.0
    %1390 = vmatpush1.msra.mxu0 0.0
    %1391 = vmatprep.subr.mxu0 0.0
    %1392 = vmatpush1.msra.mxu0 0.0
    %1393 = vmatprep.subr.mxu0 0.0
    %1394 = vmatpush1.msra.mxu0 0.0
    %1395 = vmatprep.subr.mxu0 0.0
    %1396 = vmatpush1.msra.mxu0 0.0
    %1397 = vmatprep.subr.mxu0 0.0
    %1398 = vmatpush1.msra.mxu0 0.0
    %1399 = vmatprep.subr.mxu0 0.0
    %1400 = vmatpush1.msra.mxu0 0.0
    %1401 = vmatprep.subr.mxu0 0.0
    %1402 = vmatpush1.msra.mxu0 0.0
    %1403 = vmatprep.subr.mxu0 0.0
    %1404 = vmatpush1.msra.mxu0 0.0
    %1405 = vmatprep.subr.mxu0 0.0
    %1406 = vmatpush1.msra.mxu0 0.0
    %1407 = vmatprep.subr.mxu0 0.0
    %1408 = vmatpush1.msra.mxu0 0.0
    %1409 = vmatprep.mubr.f32.mxu0 0.0
    %1410 = vmatmul.mubr.f32.gmra.mrb[0].mxu0 %v1337
    %v1411 = vpop.f32.mrb[0].mxu0
    %v1412 = vadd.f32 0.0, %v1411
    %v1413 = vpop.f32.mrb[0].mxu0
    %1414 = vmatprep.mubr.f32.mxu0 0.0
    %1415 = vmatmul.mubr.f32.gmra.mrb[0].mxu0 %v1340
    %v1416 = vpop.f32.mrb[0].mxu0
    %v1417 = vadd.f32 0.0, %v1416
    %v1418 = vpop.f32.mrb[0].mxu0
    %1419 = vmatprep.mubr.f32.mxu0 0.0
    %1420 = vmatmul.mubr.f32.gmra.mrb[0].mxu0 %v1343
    %v1421 = vpop.f32.mrb[0].mxu0
    %v1422 = vadd.f32 0.0, %v1421
    %v1423 = vpop.f32.mrb[0].mxu0
    %1424 = vdwg.mxu0
    %v1425 = vmul.f32 %v1412, %v394
    %v1426 = vmul.f32 %v1417, %v395
    %v1427 = vmul.f32 %v1422, %v396
    %v1428 = vadd.f32 %v1330, %v1425
    %v1429 = vadd.f32 %v1331, %v1426
    %v1430 = vadd.f32 %v1332, %v1427
    %1431 = vmatprep.subr.mxu0 0.0
    %1432 = vmatpush1.msra.mxu0 %v798
    %1433 = vmatprep.subr.mxu0 0.0
    %1434 = vmatpush1.msra.mxu0 %v799
    %1435 = vmatprep.subr.mxu0 0.0
    %1436 = vmatpush1.msra.mxu0 %v800
    %1437 = vmatprep.subr.mxu0 0.0
    %1438 = vmatpush1.msra.mxu0 %v801
    %1439 = vmatprep.subr.mxu0 0.0
    %1440 = vmatpush1.msra.mxu0 %v802
    %1441 = vmatprep.subr.mxu0 0.0
    %1442 = vmatpush1.msra.mxu0 %v803
    %1443 = vmatprep.subr.mxu0 0.0
    %1444 = vmatpush1.msra.mxu0 %v804
    %1445 = vmatprep.subr.mxu0 0.0
    %1446 = vmatpush1.msra.mxu0 %v805
    %1447 = vmatprep.subr.mxu0 0.0
    %1448 = vmatpush1.msra.mxu0 %v806
    %1449 = vmatprep.subr.mxu0 0.0
    %1450 = vmatpush1.msra.mxu0 %v807
    %1451 = vmatprep.subr.mxu0 0.0
    %1452 = vmatpush1.msra.mxu0 %v808
    %1453 = vmatprep.subr.mxu0 0.0
    %1454 = vmatpush1.msra.mxu0 %v809
    %1455 = vmatprep.subr.mxu0 0.0
    %1456 = vmatpush1.msra.mxu0 %v810
    %1457 = vmatprep.subr.mxu0 0.0
    %1458 = vmatpush1.msra.mxu0 %v811
    %1459 = vmatprep.subr.mxu0 0.0
    %1460 = vmatpush1.msra.mxu0 %v812
    %1461 = vmatprep.subr.mxu0 0.0
    %1462 = vmatpush1.msra.mxu0 %v813
    %1463 = vmatprep.subr.mxu0 0.0
    %1464 = vmatpush1.msra.mxu0 0.0
    %1465 = vmatprep.subr.mxu0 0.0
    %1466 = vmatpush1.msra.mxu0 0.0
    %1467 = vmatprep.subr.mxu0 0.0
    %1468 = vmatpush1.msra.mxu0 0.0
    %1469 = vmatprep.subr.mxu0 0.0
    %1470 = vmatpush1.msra.mxu0 0.0
    %1471 = vmatprep.subr.mxu0 0.0
    %1472 = vmatpush1.msra.mxu0 0.0
    %1473 = vmatprep.subr.mxu0 0.0
    %1474 = vmatpush1.msra.mxu0 0.0
    %1475 = vmatprep.subr.mxu0 0.0
    %1476 = vmatpush1.msra.mxu0 0.0
    %1477 = vmatprep.subr.mxu0 0.0
    %1478 = vmatpush1.msra.mxu0 0.0
    %1479 = vmatprep.subr.mxu0 0.0
    %1480 = vmatpush1.msra.mxu0 0.0
    %1481 = vmatprep.subr.mxu0 0.0
    %1482 = vmatpush1.msra.mxu0 0.0
    %1483 = vmatprep.subr.mxu0 0.0
    %1484 = vmatpush1.msra.mxu0 0.0
    %1485 = vmatprep.subr.mxu0 0.0
    %1486 = vmatpush1.msra.mxu0 0.0
    %1487 = vmatprep.subr.mxu0 0.0
    %1488 = vmatpush1.msra.mxu0 0.0
    %1489 = vmatprep.subr.mxu0 0.0
    %1490 = vmatpush1.msra.mxu0 0.0
    %1491 = vmatprep.subr.mxu0 0.0
    %1492 = vmatpush1.msra.mxu0 0.0
    %1493 = vmatprep.subr.mxu0 0.0
    %1494 = vmatpush1.msra.mxu0 0.0
    %1495 = vmatprep.mubr.f32.mxu0 0.0
    %1496 = vmatmul.mubr.f32.gmra.mrb[0].mxu0 %v1428
    %v1497 = vpop.f32.mrb[0].mxu0
    %v1498 = vadd.f32 %v817, %v1497
    %v1499 = vpop.f32.mrb[0].mxu0
    %1500 = vmatprep.mubr.f32.mxu0 0.0
    %1501 = vmatmul.mubr.f32.gmra.mrb[0].mxu0 %v1429
    %v1502 = vpop.f32.mrb[0].mxu0
    %v1503 = vadd.f32 %v817, %v1502
    %v1504 = vpop.f32.mrb[0].mxu0
    %1505 = vmatprep.mubr.f32.mxu0 0.0
    %1506 = vmatmul.mubr.f32.gmra.mrb[0].mxu0 %v1430
    %v1507 = vpop.f32.mrb[0].mxu0
    %v1508 = vadd.f32 %v817, %v1507
    %v1509 = vpop.f32.mrb[0].mxu0
    %1510 = vdwg.mxu0
    %1511 = vadd.xlane.f32.xlu0 %v1498
    %v1512 = vpop.xlane.xlu0 %1511
    %1513 = vadd.xlane.f32.xlu0 %v1503
    %v1514 = vpop.xlane.xlu0 %1513
    %1515 = vadd.xlane.f32.xlu0 %v1508
    %v1516 = vpop.xlane.xlu0 %1515
    %v1517 = vmul.f32 %v1512, %v904
    %v1518 = vmul.f32 %v1514, %v904
    %v1519 = vmul.f32 %v1516, %v904
    %v1520 = vsub.f32 %v1498, %v1517
    %v1521 = vsub.f32 %v1503, %v1518
    %v1522 = vsub.f32 %v1508, %v1519
    %v1523 = vmul.f32 %v1520, %v1520
    %v1524 = vmul.f32 %v1521, %v1521
    %v1525 = vmul.f32 %v1522, %v1522
    %1526 = vadd.xlane.f32.xlu0 %v1523
    %v1527 = vpop.xlane.xlu0 %1526
    %1528 = vadd.xlane.f32.xlu0 %v1524
    %v1529 = vpop.xlane.xlu0 %1528
    %1530 = vadd.xlane.f32.xlu0 %v1525
    %v1531 = vpop.xlane.xlu0 %1530
    %v1532 = vmul.f32 %v1527, %v904
    %v1533 = vmul.f32 %v1529, %v904
    %v1534 = vmul.f32 %v1531, %v904
    %v1535 = vadd.f32 %v1532, 1e-05
    %v1536 = vadd.f32 %v1533, 1e-05
    %v1537 = vadd.f32 %v1534, 1e-05
    %v1538 = vrsqrt.pop %v1535
    %v1539 = vrsqrt.pop %v1536
    %v1540 = vrsqrt.pop %v1537
    %v1541 = vmul.f32 %v1520, %v1538
    %v1542 = vmul.f32 %v1521, %v1539
    %v1543 = vmul.f32 %v1522, %v1540
    %v1544 = vmul.f32 %v1541, %v935
    %v1545 = vmul.f32 %v1542, %v935
    %v1546 = vmul.f32 %v1543, %v935
    %v1547 = vadd.f32 %v1544, %v942
    %v1548 = vadd.f32 %v1545, %v942
    %v1549 = vadd.f32 %v1546, %v942
    %v1550 = vmul.f32 %v1547, 0.5
    %v1551 = vmul.f32 %v1548, 0.5
    %v1552 = vmul.f32 %v1549, 0.5
    %v1553 = vmul.f32 %v1547, %v949
    %v1554 = vmul.f32 %v1548, %v949
    %v1555 = vmul.f32 %v1549, %v949
    %vm1556 = vcmp.ge.f32.partialorder %v1553, 0.0
    %vm1557 = vcmp.ge.f32.partialorder %v1554, 0.0
    %vm1558 = vcmp.ge.f32.partialorder %v1555, 0.0
    %v1559 = vsel %vm1556, 1.0, -1.0
    %v1560 = vsel %vm1557, 1.0, -1.0
    %v1561 = vsel %vm1558, 1.0, -1.0
    %v1562 = vand.u32 2147483647, %v1553
    %v1563 = vand.u32 2147483647, %v1554
    %v1564 = vand.u32 2147483647, %v1555
    %v1565 = vmul.f32 %v1562, 0.3275911
    %v1566 = vmul.f32 %v1563, 0.3275911
    %v1567 = vmul.f32 %v1564, 0.3275911
    %v1568 = vadd.f32 %v1565, 1.0
    %v1569 = vadd.f32 %v1566, 1.0
    %v1570 = vadd.f32 %v1567, 1.0
    %v1571 = vrcp.pop %v1568
    %v1572 = vrcp.pop %v1569
    %v1573 = vrcp.pop %v1570
    %v1574 = vmul.f32 %v1571, 1.0614054
    %v1575 = vmul.f32 %v1572, 1.0614054
    %v1576 = vmul.f32 %v1573, 1.0614054
    %v1577 = vadd.f32 %v1574, -1.4531521
    %v1578 = vadd.f32 %v1575, -1.4531521
    %v1579 = vadd.f32 %v1576, -1.4531521
    %v1580 = vmul.f32 %v1577, %v1571
    %v1581 = vmul.f32 %v1578, %v1572
    %v1582 = vmul.f32 %v1579, %v1573
    %v1583 = vadd.f32 %v1580, 1.4214138
    %v1584 = vadd.f32 %v1581, 1.4214138
    %v1585 = vadd.f32 %v1582, 1.4214138
    %v1586 = vmul.f32 %v1583, %v1571
    %v1587 = vmul.f32 %v1584, %v1572
    %v1588 = vmul.f32 %v1585, %v1573
    %v1589 = vadd.f32 %v1586, -0.28449672
    %v1590 = vadd.f32 %v1587, -0.28449672
    %v1591 = vadd.f32 %v1588, -0.28449672
    %v1592 = vmul.f32 %v1589, %v1571
    %v1593 = vmul.f32 %v1590, %v1572
    %v1594 = vmul.f32 %v1591, %v1573
    %v1595 = vadd.f32 %v1592, 0.2548296
    %v1596 = vadd.f32 %v1593, 0.2548296
    %v1597 = vadd.f32 %v1594, 0.2548296
    %v1598 = vmul.f32 %v1595, %v1571
    %v1599 = vmul.f32 %v1596, %v1572
    %v1600 = vmul.f32 %v1597, %v1573
    %v1601 = vsub.f32 0.0, %v1562
    %v1602 = vsub.f32 0.0, %v1563
    %v1603 = vsub.f32 0.0, %v1564
    %v1604 = vmul.f32 %v1601, %v1562
    %v1605 = vmul.f32 %v1602, %v1563
    %v1606 = vmul.f32 %v1603, %v1564
    %v1607 = vmul.f32 %v1604, 1.442695
    %v1608 = vpow.pop %v1607
    %v1609 = vmul.f32 %v1605, 1.442695
    %v1610 = vpow.pop %v1609
    %v1611 = vmul.f32 %v1606, 1.442695
    %v1612 = vpow.pop %v1611
    %v1613 = vmul.f32 %v1598, %v1608
    %v1614 = vmul.f32 %v1599, %v1610
    %v1615 = vmul.f32 %v1600, %v1612
    %v1616 = vsub.f32 1.0, %v1613
    %v1617 = vsub.f32 1.0, %v1614
    %v1618 = vsub.f32 1.0, %v1615
    %v1619 = vmul.f32 %v1559, %v1616
    %v1620 = vmul.f32 %v1560, %v1617
    %v1621 = vmul.f32 %v1561, %v1618
    %v1622 = vadd.f32 %v1619, 1.0
    %v1623 = vadd.f32 %v1620, 1.0
    %v1624 = vadd.f32 %v1621, 1.0
    %v1625 = vmul.f32 %v1550, %v1622
    %v1626 = vmul.f32 %v1551, %v1623
    %v1627 = vmul.f32 %v1552, %v1624
    %v1628 = vsel %vm1028, %v1625, 0.0
    %v1629 = vsel %vm1029, %v1626, 0.0
    %v1630 = vsel %vm1030, %v1627, 0.0
    %v1631 = vadd.f32 %v1628, %v1629
    %v1632 = vadd.f32 %v1631, %v1630
    %v1633 = vrot.slane %v1632, 4
    %v1634 = vadd.f32 %v1632, %v1633
    %v1635 = vrot.slane %v1634, 2
    %v1636 = vadd.f32 %v1634, %v1635
    %v1637 = vrot.slane %v1636, 1
    %v1638 = vadd.f32 %v1636, %v1637
    %v1639 = vld [vmem:[#allocation8] sm:$0x3]
    %vm1640 = vcmask 1040384
    %v1641 = vsel %vm1640, %v1041, %v1638
    %v1642 = vadd.f32 %v1639, %v1641
    %1643 = vst [vmem:[#allocation8] sm:$0x3] %v1642
    // Predicated region
    $region42: #{tpu_custom_call.1} parent=1 // pred_check
      _
    $region43: #{tpu_custom_call.1} parent=1 // pred_check_branch
      %1645 = sbr.rel (0) target = $region45
    $region44: #{tpu_custom_call.1} parent=1 // pred_region
      %s1647 = ssub.s32 32, 32
      %1648 = vsyncadd [#allocation5], %s1647
      %s1650 = sshll.u32 [#allocation8], 4
      %s1651 = int_to_ptr.vmem [resolvable:$true] %s1650
      %1653 = dma.vmem_to_hbm [thread:$0]  %s1651, 32, %s7, [#allocation5]
    $region45: #{tpu_custom_call.1} parent=1 // pred_fallthru
      _
    // Predicated region
    $region46: #{tpu_custom_call.1} parent=1 // pred_check
      _
    $region47: #{tpu_custom_call.1} parent=1 // pred_check_branch
      %1655 = sbr.rel (0) target = $region49
    $region48: #{tpu_custom_call.1} parent=1 // pred_region
      %1656 = dma.done [#allocation5], 32
    $region49: #{tpu_custom_call.1} parent=1 // pred_fallthru
      _
    %1657 = vsyncpa [#allocation4], 1
    %1658 = vsyncpa [#allocation7], 1
    %1659 = vsyncpa [#allocation5], 1

</llo_original>
